<compile_context>
chip_gen: v7x
topology: tpu7x:2x2x1
jax: 0.10.0
libtpu: 0.0.40
codegen_flags: <defaults>
</compile_context>

<pallas_src>
import functools

import jax
import jax.numpy as jnp
from jax import lax
from jax.experimental import pallas as pl
from jax.experimental.pallas import tpu as pltpu


# ----------------------------------------------------------------------------
# small helpers
# ----------------------------------------------------------------------------
def _choose_tile(total, target, quantum=128):
    """Largest divisor of `total` that is a multiple of `quantum` and <= target,
    else `total` (a full-extent block is always layout-legal)."""
    if total <= target:
        return total
    t = (min(target, total) // quantum) * quantum
    while t >= quantum:
        if total % t == 0:
            return t
        t -= quantum
    return total


def _vmem_limit_bytes():
    """Generation-aware scoped-VMEM budget: ~100 MiB on 128 MiB parts (v5e/v6e),
    clamped headroom on 64 MiB-per-TC parts (v7x)."""
    cap = 128 * 1024 * 1024
    try:
        cap = int(pltpu.get_tpu_info().vmem_capacity_bytes)
    except Exception:
        pass
    return int(max(32 * 1024 * 1024, min(100 * 1024 * 1024, cap - 16 * 1024 * 1024)))


@functools.lru_cache(maxsize=None)
def _single_buffering_supported():
    """Probe once whether BlockSpec(pipeline_mode=pl.Buffered(1)) lowers cleanly;
    used to single-buffer constant-index weight operands."""
    try:
        def _k(x_ref, w_ref, o_ref):
            o_ref[...] = x_ref[...] + w_ref[...]

        xp = jnp.zeros((8, 128), jnp.float32)
        f = pl.pallas_call(
            _k,
            out_shape=jax.ShapeDtypeStruct((8, 128), jnp.float32),
            grid=(1,),
            in_specs=[pl.BlockSpec((8, 128), lambda i: (0, 0)),
                      pl.BlockSpec((8, 128), lambda i: (0, 0),
                                   pipeline_mode=pl.Buffered(1))],
            out_specs=pl.BlockSpec((8, 128), lambda i: (0, 0)),
        )
        jax.block_until_ready(f(xp, xp))
        return True
    except Exception:
        return False


def _const_spec(a, single_buffer):
    """Full-array BlockSpec for a grid-invariant operand (weights / biases)."""
    nd = a.ndim
    if single_buffer:
        return pl.BlockSpec(a.shape, lambda *_: (0,) * nd,
                            pipeline_mode=pl.Buffered(1))
    return pl.BlockSpec(a.shape, lambda *_: (0,) * nd)


# ----------------------------------------------------------------------------
# Kernel A: rotary embedding + LayerNorm1 + K/V projection (K stored transposed)
# ----------------------------------------------------------------------------
def _rope_kv_prep_kernel(
    x_ref,                       # (1, ts, E) f32
    cos_ref, sin_ref,            # (ts, E) f32 each   (sign folded into sin)
    ln1_g_ref, ln1_b_ref,        # (1, E) f32 each
    wk_ref, bkc_ref,             # (E, E) bf16 (PyTorch rows=out), (E, 1) f32
    wv_ref, bv_ref,              # (E, E) bf16 (already transposed), (1, E) f32
    xr_ref,                      # (1, ts, E) f32
    kT_ref,                      # (1, H, D, ts) bf16  (lane dim = sequence)
    v_ref,                       # (1, H, ts, D) bf16
    *, num_heads, eps, use_roll,
):
    x = x_ref[0]                                  # (ts, E) f32
    E = x.shape[-1]
    E2 = E // 2
    D = E // num_heads

    # rotate-half RoPE; the sign flip of the first half is folded into sin_ref.
    if use_roll:
        rh = pltpu.roll(x, shift=E2, axis=1)      # XLU, free slot
    else:
        rh = jnp.concatenate([x[:, E2:], x[:, :E2]], axis=-1)
    xr = x * cos_ref[...] + rh * sin_ref[...]
    xr_ref[0] = xr

    # LayerNorm1 (f32)
    mu = jnp.mean(xr, axis=-1, keepdims=True)
    var = jnp.mean((xr - mu) ** 2, axis=-1, keepdims=True)
    h1 = (xr - mu) * jax.lax.rsqrt(var + eps) * ln1_g_ref[0] + ln1_b_ref[0]
    h1b = h1.astype(jnp.bfloat16)                 # bf16 only at the MXU boundary

    # K^T = Wk @ h1^T : contract the input dims of both operands -> (E, ts),
    # already lane-dense in the sequence dimension.  One full-E-wide matmul.
    kT = lax.dot_general(wk_ref[...], h1b, (((1,), (1,)), ((), ())),
                         preferred_element_type=jnp.float32) + bkc_ref[...]
    kTb = kT.astype(jnp.bfloat16)
    # V = h1 @ Wv^T : one full-E-wide matmul.
    v = jnp.dot(h1b, wv_ref[...], preferred_element_type=jnp.float32) + bv_ref[0]
    vb = v.astype(jnp.bfloat16)

    # Per-head stores only (no per-head matmuls): K per head is a cheap aligned
    # sublane slice; V per head is a lane slice.
    for hd in range(num_heads):
        kT_ref[0, hd] = kTb[hd * D:(hd + 1) * D, :]
        v_ref[0, hd] = vb[:, hd * D:(hd + 1) * D]


# ----------------------------------------------------------------------------
# Kernel B: streaming attention (online softmax) + SwiGLU FFN + top-k MoE
# ----------------------------------------------------------------------------
def _hybrid_main_kernel(
    xr_ref,                      # (1, tq, E) f32     rotated input (query tile)
    kT_ref,                      # (1, H, D, tkv) bf16
    v_ref,                       # (1, H, tkv, D) bf16
    ln1_g_ref, ln1_b_ref,        # (1, E) f32
    wq_ref, bq_ref,              # (E, E) bf16 (1/sqrt(D) folded in), (1, E) f32
    woh_ref, bo_ref,             # (H, D, E) bf16, (1, E) f32
    ln2_g_ref, ln2_b_ref,        # (1, E) f32
    w1v_ref, b1v_ref,            # (E, F/2) bf16, (1, F/2) f32  (SwiGLU value half)
    w1g_ref, b1g_ref,            # (E, F/2) bf16, (1, F/2) f32  (SwiGLU gate half)
    w2_ref, b2_ref,              # (F/2, E) bf16, (1, E) f32
    lnr_g_ref, lnr_b_ref,        # (1, E) f32
    wr_ref,                      # (E, n_exp) f32     (router kept f32: tiny matmul,
                                 #                     keeps top-k decisions exact)
    wie_ref,                     # (n_exp, E, Fe) bf16
    woe_ref,                     # (n_exp, Fe, E) bf16
    out_ref,                     # (1, tq, E)
    logits_ref,                  # (1, tq, n_exp) f32
    q_scr,                       # (H, tq, D) bf16    scratch (per q-tile)
    m_scr, l_scr,                # (H, tq, 1) f32     online-softmax state
    acc_scr,                     # (H, tq, D) f32     running P@V accumulator
    *, num_heads, num_experts, top_k, eps,
):
    H = num_heads
    D = q_scr.shape[-1]
    tq = xr_ref.shape[1]
    E = xr_ref.shape[2]
    j = pl.program_id(2)
    nkv = pl.num_programs(2)

    def layer_norm(vv, g, b):
        mu = jnp.mean(vv, axis=-1, keepdims=True)
        var = jnp.mean((vv - mu) ** 2, axis=-1, keepdims=True)
        return (vv - mu) * jax.lax.rsqrt(var + eps) * g + b

    # ---- first KV chunk of this q-tile: compute Q, reset accumulators --------
    @pl.when(j == 0)
    def _init():
        xr = xr_ref[0]
        h1 = layer_norm(xr, ln1_g_ref[0], ln1_b_ref[0])
        qall = (jnp.dot(h1.astype(jnp.bfloat16), wq_ref[...],
                        preferred_element_type=jnp.float32) + bq_ref[0]
                ).astype(jnp.bfloat16)                       # (tq, E), scale folded
        for hd in range(H):                                  # store-only split
            q_scr[hd] = qall[:, hd * D:(hd + 1) * D]
        m_scr[...] = jnp.full_like(m_scr, -jnp.inf)
        l_scr[...] = jnp.zeros_like(l_scr)
        acc_scr[...] = jnp.zeros_like(acc_scr)

    # ---- online-softmax update for this KV chunk, per head (fori_loop) -------
    def head_step(hd, carry):
        qh = q_scr[hd]                                       # (tq, D) bf16
        s = jnp.dot(qh, kT_ref[0, hd],
                    preferred_element_type=jnp.float32)      # (tq, tkv) f32
        m_prev = m_scr[hd]
        m_new = jnp.maximum(m_prev, jnp.max(s, axis=-1, keepdims=True))
        alpha = jnp.exp(m_prev - m_new)
        p = jnp.exp(s - m_new)
        l_scr[hd] = alpha * l_scr[hd] + jnp.sum(p, axis=-1, keepdims=True)
        acc_scr[hd] = alpha * acc_scr[hd] + jnp.dot(
            p.astype(jnp.bfloat16), v_ref[0, hd],
            preferred_element_type=jnp.float32)              # (tq, D)
        m_scr[hd] = m_new
        return carry

    lax.fori_loop(0, H, head_step, 0)

    # ---- last KV chunk: finalize attention, FFN (dense) and MoE (sparse) -----
    @pl.when(j == nkv - 1)
    def _finalize():
        xr = xr_ref[0]

        # per-head normalize + output projection, accumulated lane-dense (tq, E)
        def head_out(hd, attn):
            inv = pl.reciprocal(l_scr[hd], approx=True)      # EUP slot
            ctx = (acc_scr[hd] * inv).astype(jnp.bfloat16)   # (tq, D)
            return attn + jnp.dot(ctx, woh_ref[hd],
                                  preferred_element_type=jnp.float32)
        attn = lax.fori_loop(0, H, head_out, jnp.zeros((tq, E), jnp.float32))
        x1 = xr + attn + bo_ref[0]                           # residual 1

        # feed-forward (SwiGLU); W1 pre-split host-side into value / gate halves
        h2 = layer_norm(x1, ln2_g_ref[0], ln2_b_ref[0]).astype(jnp.bfloat16)
        f_val = jnp.dot(h2, w1v_ref[...],
                        preferred_element_type=jnp.float32) + b1v_ref[0]
        f_gate = jnp.dot(h2, w1g_ref[...],
                         preferred_element_type=jnp.float32) + b1g_ref[0]
        sig = pl.reciprocal(1.0 + jnp.exp(-f_gate), approx=True)   # silu via EUP
        g = f_val * (f_gate * sig)
        ffn = jnp.dot(g.astype(jnp.bfloat16), w2_ref[...],
                      preferred_element_type=jnp.float32) + b2_ref[0]
        dense = x1 + ffn                                     # residual 2

        # sparse MoE residual branch
        hr = layer_norm(xr, lnr_g_ref[0], lnr_b_ref[0])
        logits = jnp.dot(hr, wr_ref[...], preferred_element_type=jnp.float32)
        logits_ref[0] = logits.astype(logits_ref.dtype)

        lm = jnp.max(logits, axis=-1, keepdims=True)
        le = jnp.exp(logits - lm)
        probs = le * pl.reciprocal(jnp.sum(le, axis=-1, keepdims=True),
                                   approx=True)

        # top-k expert mask (iterative max; ties -> lowest index, as lax.top_k)
        iota = jax.lax.broadcasted_iota(jnp.int32, probs.shape, 1)
        work = probs
        mask = jnp.zeros_like(probs)
        for _ in range(top_k):
            mx = jnp.max(work, axis=-1, keepdims=True)
            idx = jnp.min(jnp.where(work >= mx, iota, num_experts),
                          axis=-1, keepdims=True)
            sel = (iota == idx).astype(probs.dtype)
            mask = mask + sel
            work = jnp.where(sel > 0, -jnp.inf, work)
        gate_w = mask * probs                                # (tq, n_exp)

        hrb = hr.astype(jnp.bfloat16)

        def expert_body(e, sparse):
            gate_e = jnp.sum(jnp.where(iota == e, gate_w, 0.0),
                             axis=-1, keepdims=True)         # (tq, 1), no dyn slice
            ge = jnp.dot(hrb, wie_ref[e], preferred_element_type=jnp.float32)
            ge = jax.nn.gelu(ge, approximate=False)          # exact GELU (module default)
            oe = jnp.dot(ge.astype(jnp.bfloat16), woe_ref[e],
                         preferred_element_type=jnp.float32)
            return sparse + oe * gate_e

        sparse = lax.fori_loop(0, num_experts, expert_body,
                               jnp.zeros((tq, E), jnp.float32))

        out_ref[0] = (dense + sparse).astype(out_ref.dtype)


# ----------------------------------------------------------------------------
# Wrapper
# ----------------------------------------------------------------------------
def hybrid_sparse_transformer_layer(x, params, *, num_heads, num_experts,
                                    top_k=2, eps=1e-5,
                                    q_tile=None, kv_tile=None, s_tile=None):
    """x: (B, S, E) f32.  params: PyTorch-convention weights (see __main__)."""
    B, S, E = x.shape
    H = num_heads
    assert E % H == 0 and E % 2 == 0
    D = E // H
    F = params["ffn_w1"].shape[0]          # ffn_dim (SwiGLU => hidden out = F//2)
    Fh = F // 2
    Fe = params["expert_wi"].shape[1]      # expert hidden dim
    n_exp = num_experts
    f32, bf = jnp.float32, jnp.bfloat16
    scale = 1.0 / (D ** 0.5)

    # tiles: non-None, 128-quantized defaults (clamped to S)
    tq = _choose_tile(S, 256) if q_tile is None else q_tile
    ts = _choose_tile(S, 512) if s_tile is None else s_tile
    tkv = _choose_tile(S, 512) if kv_tile is None else kv_tile
    assert S % tq == 0 and S % ts == 0 and S % tkv == 0

    row = lambda v: v.reshape(1, -1).astype(f32)

    # ---- host-side weight re-layout (PyTorch (out,in) -> x @ W forms) ----
    in_w, in_b = params["in_proj_w"], params["in_proj_b"]
    wq = (in_w[:E].T * scale).astype(bf)                         # (E, E), 1/sqrt(D) folded
    bq = row(in_b[:E] * scale)
    wk = in_w[E:2 * E].astype(bf)                                # (E, E) rows=out (for K^T dot)
    bkc = in_b[E:2 * E].reshape(E, 1).astype(f32)                # column bias for K^T
    wv = in_w[2 * E:].T.astype(bf)                               # (E, E)
    bv = row(in_b[2 * E:])
    woh = params["out_proj_w"].T.reshape(H, D, E).astype(bf)     # per-head out-proj slabs
    bo = row(params["out_proj_b"])

    w1t = params["ffn_w1"].T                                     # (E, F)
    w1v, w1g = w1t[:, :Fh].astype(bf), w1t[:, Fh:].astype(bf)
    b1v, b1g = row(params["ffn_b1"][:Fh]), row(params["ffn_b1"][Fh:])
    w2 = params["ffn_w2"].T.astype(bf)                           # (Fh, E)
    b2 = row(params["ffn_b2"])

    wr = params["router_w"].T.astype(f32)                        # (E, n_exp)
    wie = jnp.transpose(params["expert_wi"], (0, 2, 1)).astype(bf)   # (n, E, Fe)
    woe = jnp.transpose(params["expert_wo"], (0, 2, 1)).astype(bf)   # (n, Fe, E)

    # rotary tables (rotate-half); sign of the rotated half folded into sin
    pos = jnp.arange(S, dtype=f32)
    inv_freq = 1.0 / (10000.0 ** (jnp.arange(0, E, 2, dtype=f32) / E))
    freqs = pos[:, None] * inv_freq[None, :]
    emb = jnp.concatenate([freqs, freqs], axis=-1)
    cos_t = jnp.cos(emb)
    sign = jnp.concatenate([-jnp.ones((E // 2,), f32), jnp.ones((E // 2,), f32)])
    sin_t = jnp.sin(emb) * sign[None, :]

    use_roll = (E % 256 == 0)          # pltpu.roll only for wide lane-aligned rows
    single_buf = _single_buffering_supported()
    vmem_limit = _vmem_limit_bytes()

    def nbytes(*arrs):
        return int(sum(int(a.size) * a.dtype.itemsize for a in arrs))

    ln1_g, ln1_b = row(params["ln1_g"]), row(params["ln1_b"])

    # ---------------- kernel A: rotary + LN1 + K/V ----------------
    prep_args = (x, cos_t, sin_t, ln1_g, ln1_b, wk, bkc, wv, bv)
    prep_in_specs = [
        pl.BlockSpec((1, ts, E), lambda b, j: (b, j, 0)),
        pl.BlockSpec((ts, E), lambda b, j: (j, 0)),
        pl.BlockSpec((ts, E), lambda b, j: (j, 0)),
    ] + [_const_spec(a, single_buf) for a in prep_args[3:]]
    prep_out_specs = (
        pl.BlockSpec((1, ts, E), lambda b, j: (b, j, 0)),
        pl.BlockSpec((1, H, D, ts), lambda b, j: (b, 0, 0, j)),
        pl.BlockSpec((1, H, ts, D), lambda b, j: (b, 0, j, 0)),
    )
    prep_cost = pl.CostEstimate(
        flops=int(4 * B * S * E * E),
        transcendentals=0,
        bytes_accessed=int(nbytes(*prep_args) + B * S * E * 4 + 2 * B * S * E * 2))

    xr, kT, v = pl.pallas_call(
        functools.partial(_rope_kv_prep_kernel, num_heads=H, eps=eps,
                          use_roll=use_roll),
        out_shape=(jax.ShapeDtypeStruct((B, S, E), f32),
                   jax.ShapeDtypeStruct((B, H, D, S), bf),
                   jax.ShapeDtypeStruct((B, H, S, D), bf)),
        grid_spec=pltpu.PrefetchScalarGridSpec(
            num_scalar_prefetch=0, grid=(B, S // ts),
            in_specs=prep_in_specs, out_specs=prep_out_specs),
        compiler_params=pltpu.CompilerParams(
            dimension_semantics=("parallel", "parallel"),
            vmem_limit_bytes=vmem_limit),
        cost_estimate=prep_cost,
    )(*prep_args)

    # ---------------- kernel B: streaming attention + FFN + sparse MoE --------
    main_args = (xr, kT, v,
                 ln1_g, ln1_b, wq, bq, woh, bo,
                 row(params["ln2_g"]), row(params["ln2_b"]),
                 w1v, b1v, w1g, b1g, w2, b2,
                 row(params["lnr_g"]), row(params["lnr_b"]),
                 wr, wie, woe)
    main_in_specs = [
        pl.BlockSpec((1, tq, E), lambda b, i, j: (b, i, 0)),
        pl.BlockSpec((1, H, D, tkv), lambda b, i, j: (b, 0, 0, j)),
        pl.BlockSpec((1, H, tkv, D), lambda b, i, j: (b, 0, j, 0)),
    ] + [_const_spec(a, single_buf) for a in main_args[3:]]
    main_out_specs = (
        pl.BlockSpec((1, tq, E), lambda b, i, j: (b, i, 0)),
        pl.BlockSpec((1, tq, n_exp), lambda b, i, j: (b, i, 0)),
    )

    per_tok_flops = (4 * E * E + 4 * E * S + 3 * E * F
                     + 2 * E * n_exp + 4 * n_exp * E * Fe)
    main_cost = pl.CostEstimate(
        flops=int(B * S * per_tok_flops),
        transcendentals=int(B * S * (H * S + Fh + n_exp * Fe + n_exp)),
        bytes_accessed=int(nbytes(*main_args[3:]) + 2 * B * S * E * 4
                           + B * S * n_exp * 4
                           + (S // tq) * 2 * B * H * S * D * 2))

    out, logits = pl.pallas_call(
        functools.partial(_hybrid_main_kernel, num_heads=H,
                          num_experts=n_exp, top_k=top_k, eps=eps),
        out_shape=(jax.ShapeDtypeStruct((B, S, E), x.dtype),
                   jax.ShapeDtypeStruct((B, S, n_exp), f32)),
        grid_spec=pltpu.PrefetchScalarGridSpec(
            num_scalar_prefetch=0, grid=(B, S // tq, S // tkv),
            in_specs=main_in_specs, out_specs=main_out_specs,
            scratch_shapes=[
                pltpu.VMEM((H, tq, D), bf),          # Q per head (per q-tile)
                pltpu.VMEM((H, tq, 1), jnp.float32),  # online-softmax running max
                pltpu.VMEM((H, tq, 1), jnp.float32),  # online-softmax running denom
                pltpu.VMEM((H, tq, D), jnp.float32),  # running P@V accumulator
            ]),
        compiler_params=pltpu.CompilerParams(
            dimension_semantics=("parallel", "parallel", "arbitrary"),
            vmem_limit_bytes=vmem_limit),
        cost_estimate=main_cost,
    )(*main_args)

    return out, logits


# ----------------------------------------------------------------------------
# Pure-JAX reference (mirrors the PyTorch module, eval mode, no masks)
# ----------------------------------------------------------------------------
def _reference(x, p, *, num_heads, num_experts, top_k=2, eps=1e-5):
    B, S, E = x.shape
    H, D = num_heads, E // num_heads

    pos = jnp.arange(S, dtype=jnp.float32)
    inv_freq = 1.0 / (10000.0 ** (jnp.arange(0, E, 2, dtype=jnp.float32) / E))
    freqs = pos[:, None] * inv_freq[None, :]
    emb = jnp.concatenate([freqs, freqs], axis=-1)
    cos, sin = jnp.cos(emb), jnp.sin(emb)
    rh = jnp.concatenate([-x[..., E // 2:], x[..., :E // 2]], axis=-1)
    xr = x * cos + rh * sin

    def ln(v, g, b):
        mu = jnp.mean(v, -1, keepdims=True)
        var = jnp.mean((v - mu) ** 2, -1, keepdims=True)
        return (v - mu) / jnp.sqrt(var + eps) * g + b

    # dense transformer (pre-norm, MHA, SwiGLU FFN)
    h = ln(xr, p["ln1_g"], p["ln1_b"])
    qkv = h @ p["in_proj_w"].T + p["in_proj_b"]
    q, k, v = jnp.split(qkv, 3, axis=-1)
    q = q.reshape(B, S, H, D).transpose(0, 2, 1, 3)
    k = k.reshape(B, S, H, D).transpose(0, 2, 1, 3)
    v = v.reshape(B, S, H, D).transpose(0, 2, 1, 3)
    s = jnp.einsum("bhqd,bhkd->bhqk", q, k) / (D ** 0.5)
    a = jax.nn.softmax(s, axis=-1)
    o = jnp.einsum("bhqk,bhkd->bhqd", a, v).transpose(0, 2, 1, 3).reshape(B, S, E)
    o = o @ p["out_proj_w"].T + p["out_proj_b"]
    x1 = xr + o
    h2 = ln(x1, p["ln2_g"], p["ln2_b"])
    f = h2 @ p["ffn_w1"].T + p["ffn_b1"]
    fv, fg = jnp.split(f, 2, axis=-1)
    dense = x1 + (fv * jax.nn.silu(fg)) @ p["ffn_w2"].T + p["ffn_b2"]

    # sparse MoE residual
    hr = ln(xr, p["lnr_g"], p["lnr_b"])
    logits = hr @ p["router_w"].T
    probs = jax.nn.softmax(logits, axis=-1)
    _, top_idx = jax.lax.top_k(probs, top_k)
    mask = jnp.sum(jax.nn.one_hot(top_idx, num_experts, dtype=probs.dtype), axis=-2)
    gate = mask * probs
    sparse = jnp.zeros_like(x)
    for e in range(num_experts):
        ge = jax.nn.gelu(hr @ p["expert_wi"][e].T, approximate=False)
        sparse = sparse + (ge @ p["expert_wo"][e].T) * gate[..., e:e + 1]
    return dense + sparse, logits


if __name__ == "__main__":
    B, S, E, F, H = 2, 8, 32, 64, 4            # swiglu => FFN hidden-out = F // 2
    Fe, NEXP, TOPK = 32, 4, 2                  # expert hidden dim, num experts, top_k

    key = jax.random.PRNGKey(0)
    ks = jax.random.split(key, 20)
    x = jax.random.normal(ks[0], (B, S, E), dtype=jnp.float32)

    nrm = lambda k, shp, s=1.0: s * jax.random.normal(k, shp, jnp.float32)
    params = {
        "ln1_g": 1.0 + nrm(ks[1], (E,), 0.01), "ln1_b": nrm(ks[2], (E,), 0.01),
        "ln2_g": 1.0 + nrm(ks[3], (E,), 0.01), "ln2_b": nrm(ks[4], (E,), 0.01),
        "lnr_g": 1.0 + nrm(ks[5], (E,), 0.01), "lnr_b": nrm(ks[6], (E,), 0.01),
        "in_proj_w": nrm(ks[7], (3 * E, E), 0.05), "in_proj_b": nrm(ks[8], (3 * E,), 0.01),
        "out_proj_w": nrm(ks[9], (E, E), 0.05), "out_proj_b": nrm(ks[10], (E,), 0.01),
        "ffn_w1": nrm(ks[11], (F, E), 0.05), "ffn_b1": nrm(ks[12], (F,), 0.01),
        "ffn_w2": nrm(ks[13], (E, F // 2), 0.05), "ffn_b2": nrm(ks[14], (E,), 0.01),
        "router_w": nrm(ks[15], (NEXP, E), 0.1),
        "expert_wi": nrm(ks[16], (NEXP, Fe, E), 0.05),
        "expert_wo": nrm(ks[17], (NEXP, E, Fe), 0.05),
    }

    out, router_logits = hybrid_sparse_transformer_layer(
        x, params, num_heads=H, num_experts=NEXP, top_k=TOPK)
    out = jax.block_until_ready(out)
    router_logits = jax.block_until_ready(router_logits)

    ref_out, ref_logits = _reference(x, params, num_heads=H,
                                     num_experts=NEXP, top_k=TOPK)

    assert out.shape == (B, S, E) and router_logits.shape == (B, S, NEXP)
    assert jnp.allclose(out, ref_out, atol=3e-2, rtol=3e-2)
    assert jnp.allclose(router_logits, ref_logits, atol=3e-2, rtol=3e-2)

    print("KERNEL_OK")
</pallas_src>

<mosaic_0001>
module attributes {stable_mosaic.version = 11 : i64} {
  func.func @_k(%arg0: i32, %arg1: memref<8x128xf32, #tpu.memory_space<vmem>>, %arg2: memref<8x128xf32, #tpu.memory_space<vmem>>, %arg3: memref<8x128xf32, #tpu.memory_space<vmem>>) attributes {dimension_semantics = [#tpu.dimension_semantics<arbitrary>], iteration_bounds = array<i64: 1>, scalar_prefetch = 0 : i64, scratch_operands = 0 : i64, tpu.core_type = #tpu.core_type<tc>, window_params = [{pipeline_mode = #tpu.pipeline_mode<synchronous>, transform_indices = @transform_0, window_bounds = array<i64: 8, 128>}, {pipeline_mode = #tpu.pipeline_mode<synchronous>, transform_indices = @transform_1, window_bounds = array<i64: 8, 128>}, {pipeline_mode = #tpu.pipeline_mode<synchronous>, transform_indices = @transform_2, window_bounds = array<i64: 8, 128>}]} {
    %c0 = arith.constant 0 : index
    %c0_0 = arith.constant 0 : index
    %0 = vector.load %arg1[%c0, %c0_0] : memref<8x128xf32, #tpu.memory_space<vmem>>, vector<8x128xf32>
    %c0_1 = arith.constant 0 : index
    %c0_2 = arith.constant 0 : index
    %1 = vector.load %arg2[%c0_1, %c0_2] : memref<8x128xf32, #tpu.memory_space<vmem>>, vector<8x128xf32>
    %2 = arith.addf %0, %1 : vector<8x128xf32>
    %c0_3 = arith.constant 0 : index
    %c0_4 = arith.constant 0 : index
    %3 = vector.load %arg3[%c0_3, %c0_4] : memref<8x128xf32, #tpu.memory_space<vmem>>, vector<8x128xf32>
    tpu.vector_store %arg3[%c0_3, %c0_4], %2 {strides = array<i32>} : memref<8x128xf32, #tpu.memory_space<vmem>>, vector<8x128xf32>,
    return
  }
  func.func @transform_0(%arg0: i32) -> (i32, i32) {
    %c0_i32 = arith.constant 0 : i32
    %c0_i32_0 = arith.constant 0 : i32
    %c0_i32_1 = arith.constant 0 : i32
    return %c0_i32, %c0_i32_0 : i32, i32
  }
  func.func @transform_1(%arg0: i32) -> (i32, i32) {
    %c0_i32 = arith.constant 0 : i32
    %c0_i32_0 = arith.constant 0 : i32
    %c0_i32_1 = arith.constant 0 : i32
    return %c0_i32, %c0_i32_0 : i32, i32
  }
  func.func @transform_2(%arg0: i32) -> (i32, i32) {
    %c0_i32 = arith.constant 0 : i32
    %c0_i32_0 = arith.constant 0 : i32
    %c0_i32_1 = arith.constant 0 : i32
    return %c0_i32, %c0_i32_0 : i32, i32
  }
}

module attributes {stable_mosaic.version = 11 : i64} {
  func.func @_rope_kv_prep_kernel(%arg0: i32, %arg1: i32, %arg2: memref<1x8x32xf32, #tpu.memory_space<vmem>>, %arg3: memref<8x32xf32, #tpu.memory_space<vmem>>, %arg4: memref<8x32xf32, #tpu.memory_space<vmem>>, %arg5: memref<1x32xf32, #tpu.memory_space<vmem>>, %arg6: memref<1x32xf32, #tpu.memory_space<vmem>>, %arg7: memref<32x32xbf16, #tpu.memory_space<vmem>>, %arg8: memref<32x1xf32, #tpu.memory_space<vmem>>, %arg9: memref<32x32xbf16, #tpu.memory_space<vmem>>, %arg10: memref<1x32xf32, #tpu.memory_space<vmem>>, %arg11: memref<1x8x32xf32, #tpu.memory_space<vmem>>, %arg12: memref<1x4x8x8xbf16, #tpu.memory_space<vmem>>, %arg13: memref<1x4x8x8xbf16, #tpu.memory_space<vmem>>) attributes {dimension_semantics = [#tpu.dimension_semantics<parallel>, #tpu.dimension_semantics<parallel>], iteration_bounds = array<i64: 2, 1>, scalar_prefetch = 0 : i64, scratch_operands = 0 : i64, tpu.core_type = #tpu.core_type<tc>, window_params = [{transform_indices = @transform_0, window_bounds = array<i64: 1, 8, 32>}, {transform_indices = @transform_1, window_bounds = array<i64: 8, 32>}, {transform_indices = @transform_2, window_bounds = array<i64: 8, 32>}, {pipeline_mode = #tpu.pipeline_mode<synchronous>, transform_indices = @transform_3, window_bounds = array<i64: 1, 32>}, {pipeline_mode = #tpu.pipeline_mode<synchronous>, transform_indices = @transform_4, window_bounds = array<i64: 1, 32>}, {pipeline_mode = #tpu.pipeline_mode<synchronous>, transform_indices = @transform_5, window_bounds = array<i64: 32, 32>}, {pipeline_mode = #tpu.pipeline_mode<synchronous>, transform_indices = @transform_6, window_bounds = array<i64: 32, 1>}, {pipeline_mode = #tpu.pipeline_mode<synchronous>, transform_indices = @transform_7, window_bounds = array<i64: 32, 32>}, {pipeline_mode = #tpu.pipeline_mode<synchronous>, transform_indices = @transform_8, window_bounds = array<i64: 1, 32>}, {transform_indices = @transform_9, window_bounds = array<i64: 1, 8, 32>}, {transform_indices = @transform_10, window_bounds = array<i64: 1, 4, 8, 8>}, {transform_indices = @transform_11, window_bounds = array<i64: 1, 4, 8, 8>}]} {
    %c0 = arith.constant 0 : index
    %c0_0 = arith.constant 0 : index
    %c0_1 = arith.constant 0 : index
    %0 = vector.load %arg2[%c0, %c0_0, %c0_1] : memref<1x8x32xf32, #tpu.memory_space<vmem>>, vector<1x8x32xf32>
    %1 = vector.shape_cast %0 : vector<1x8x32xf32> to vector<8x32xf32>
    %2 = vector.extract_strided_slice %1 {offsets = [0, 16], sizes = [8, 16], strides = [1, 1]} : vector<8x32xf32> to vector<8x16xf32>
    %3 = vector.extract_strided_slice %1 {offsets = [0, 0], sizes = [8, 16], strides = [1, 1]} : vector<8x32xf32> to vector<8x16xf32>
    %4 = tpu.concatenate %2, %3 in 1 : vector<8x16xf32>, vector<8x16xf32> -> vector<8x32xf32>
    %c0_2 = arith.constant 0 : index
    %c0_3 = arith.constant 0 : index
    %5 = vector.load %arg3[%c0_2, %c0_3] : memref<8x32xf32, #tpu.memory_space<vmem>>, vector<8x32xf32>
    %6 = arith.mulf %1, %5 : vector<8x32xf32>
    %c0_4 = arith.constant 0 : index
    %c0_5 = arith.constant 0 : index
    %7 = vector.load %arg4[%c0_4, %c0_5] : memref<8x32xf32, #tpu.memory_space<vmem>>, vector<8x32xf32>
    %8 = arith.mulf %4, %7 : vector<8x32xf32>
    %9 = arith.addf %6, %8 : vector<8x32xf32>
    %c0_6 = arith.constant 0 : index
    %c0_7 = arith.constant 0 : index
    %c0_8 = arith.constant 0 : index
    %10 = vector.load %arg11[%c0_6, %c0_7, %c0_8] : memref<1x8x32xf32, #tpu.memory_space<vmem>>, vector<1x8x32xf32>
    %11 = vector.shape_cast %10 : vector<1x8x32xf32> to vector<8x32xf32>
    %12 = vector.shape_cast %9 : vector<8x32xf32> to vector<1x8x32xf32>
    tpu.vector_store %arg11[%c0_6, %c0_7, %c0_8], %12 {strides = array<i32>} : memref<1x8x32xf32, #tpu.memory_space<vmem>>, vector<1x8x32xf32>,
    %cst = arith.constant dense<0.000000e+00> : vector<8xf32>
    %13 = vector.multi_reduction <add>, %9, %cst [1] : vector<8x32xf32> to vector<8xf32>
    %14 = vector.shape_cast %13 : vector<8xf32> to vector<8x1xf32>
    %cst_9 = arith.constant 3.200000e+01 : f32
    %15 = vector.broadcast %cst_9 : f32 to vector<8x1xf32>
    %16 = arith.divf %14, %15 : vector<8x1xf32>
    %17 = vector.broadcast %16 : vector<8x1xf32> to vector<8x32xf32>
    %18 = arith.subf %9, %17 : vector<8x32xf32>
    %19 = arith.mulf %18, %18 : vector<8x32xf32>
    %cst_10 = arith.constant dense<0.000000e+00> : vector<8xf32>
    %20 = vector.multi_reduction <add>, %19, %cst_10 [1] : vector<8x32xf32> to vector<8xf32>
    %21 = vector.shape_cast %20 : vector<8xf32> to vector<8x1xf32>
    %cst_11 = arith.constant 3.200000e+01 : f32
    %22 = vector.broadcast %cst_11 : f32 to vector<8x1xf32>
    %23 = arith.divf %21, %22 : vector<8x1xf32>
    %24 = vector.broadcast %16 : vector<8x1xf32> to vector<8x32xf32>
    %25 = arith.subf %9, %24 : vector<8x32xf32>
    %cst_12 = arith.constant 9.99999974E-6 : f32
    %26 = vector.broadcast %cst_12 : f32 to vector<8x1xf32>
    %27 = arith.addf %23, %26 : vector<8x1xf32>
    %28 = math.rsqrt %27 : vector<8x1xf32>
    %29 = vector.broadcast %28 : vector<8x1xf32> to vector<8x32xf32>
    %30 = arith.mulf %25, %29 : vector<8x32xf32>
    %c0_13 = arith.constant 0 : index
    %c0_14 = arith.constant 0 : index
    %31 = vector.load %arg5[%c0_13, %c0_14] : memref<1x32xf32, #tpu.memory_space<vmem>>, vector<1x32xf32>
    %32 = vector.shape_cast %31 : vector<1x32xf32> to vector<32xf32>
    %33 = vector.shape_cast %32 : vector<32xf32> to vector<1x32xf32>
    %34 = vector.broadcast %33 : vector<1x32xf32> to vector<8x32xf32>
    %35 = arith.mulf %30, %34 : vector<8x32xf32>
    %c0_15 = arith.constant 0 : index
    %c0_16 = arith.constant 0 : index
    %36 = vector.load %arg6[%c0_15, %c0_16] : memref<1x32xf32, #tpu.memory_space<vmem>>, vector<1x32xf32>
    %37 = vector.shape_cast %36 : vector<1x32xf32> to vector<32xf32>
    %38 = vector.shape_cast %37 : vector<32xf32> to vector<1x32xf32>
    %39 = vector.broadcast %38 : vector<1x32xf32> to vector<8x32xf32>
    %40 = arith.addf %35, %39 : vector<8x32xf32>
    %41 = arith.truncf %40 : vector<8x32xf32> to vector<8x32xbf16>
    %c0_17 = arith.constant 0 : index
    %c0_18 = arith.constant 0 : index
    %42 = vector.load %arg7[%c0_17, %c0_18] : memref<32x32xbf16, #tpu.memory_space<vmem>>, vector<32x32xbf16>
    %cst_19 = arith.constant dense<0.000000e+00> : vector<32x8xf32>
    %43 = tpu.matmul %42, %41, %cst_19 {dimension_numbers = #tpu.dot_dimension_numbers<[1], [1], [0], [0], [0, 0, 1, 0], [], []>} : vector<32x32xbf16>, vector<8x32xbf16>, vector<32x8xf32> -> vector<32x8xf32>
    %c0_20 = arith.constant 0 : index
    %c0_21 = arith.constant 0 : index
    %44 = vector.load %arg8[%c0_20, %c0_21] : memref<32x1xf32, #tpu.memory_space<vmem>>, vector<32x1xf32>
    %45 = vector.broadcast %44 : vector<32x1xf32> to vector<32x8xf32>
    %46 = arith.addf %43, %45 : vector<32x8xf32>
    %47 = arith.truncf %46 : vector<32x8xf32> to vector<32x8xbf16>
    %c0_22 = arith.constant 0 : index
    %c0_23 = arith.constant 0 : index
    %48 = vector.load %arg9[%c0_22, %c0_23] : memref<32x32xbf16, #tpu.memory_space<vmem>>, vector<32x32xbf16>
    %cst_24 = arith.constant dense<0.000000e+00> : vector<8x32xf32>
    %49 = tpu.matmul %41, %48, %cst_24 {dimension_numbers = #tpu.dot_dimension_numbers<[1], [0], [0], [1], [0, 0, 1, 1], [], []>} : vector<8x32xbf16>, vector<32x32xbf16>, vector<8x32xf32> -> vector<8x32xf32>
    %c0_25 = arith.constant 0 : index
    %c0_26 = arith.constant 0 : index
    %50 = vector.load %arg10[%c0_25, %c0_26] : memref<1x32xf32, #tpu.memory_space<vmem>>, vector<1x32xf32>
    %51 = vector.shape_cast %50 : vector<1x32xf32> to vector<32xf32>
    %52 = vector.shape_cast %51 : vector<32xf32> to vector<1x32xf32>
    %53 = vector.broadcast %52 : vector<1x32xf32> to vector<8x32xf32>
    %54 = arith.addf %49, %53 : vector<8x32xf32>
    %55 = arith.truncf %54 : vector<8x32xf32> to vector<8x32xbf16>
    %56 = vector.extract_strided_slice %47 {offsets = [0, 0], sizes = [8, 8], strides = [1, 1]} : vector<32x8xbf16> to vector<8x8xbf16>
    %c0_27 = arith.constant 0 : index
    %c0_28 = arith.constant 0 : index
    %c0_29 = arith.constant 0 : index
    %c0_30 = arith.constant 0 : index
    %57 = vector.load %arg12[%c0_27, %c0_28, %c0_29, %c0_30] : memref<1x4x8x8xbf16, #tpu.memory_space<vmem>>, vector<1x1x8x8xbf16>
    %58 = vector.shape_cast %57 : vector<1x1x8x8xbf16> to vector<8x8xbf16>
    %59 = vector.shape_cast %56 : vector<8x8xbf16> to vector<1x1x8x8xbf16>
    tpu.vector_store %arg12[%c0_27, %c0_28, %c0_29, %c0_30], %59 {strides = array<i32>} : memref<1x4x8x8xbf16, #tpu.memory_space<vmem>>, vector<1x1x8x8xbf16>,
    %60 = vector.extract_strided_slice %55 {offsets = [0, 0], sizes = [8, 8], strides = [1, 1]} : vector<8x32xbf16> to vector<8x8xbf16>
    %c0_31 = arith.constant 0 : index
    %c0_32 = arith.constant 0 : index
    %c0_33 = arith.constant 0 : index
    %c0_34 = arith.constant 0 : index
    %61 = vector.load %arg13[%c0_31, %c0_32, %c0_33, %c0_34] : memref<1x4x8x8xbf16, #tpu.memory_space<vmem>>, vector<1x1x8x8xbf16>
    %62 = vector.shape_cast %61 : vector<1x1x8x8xbf16> to vector<8x8xbf16>
    %63 = vector.shape_cast %60 : vector<8x8xbf16> to vector<1x1x8x8xbf16>
    tpu.vector_store %arg13[%c0_31, %c0_32, %c0_33, %c0_34], %63 {strides = array<i32>} : memref<1x4x8x8xbf16, #tpu.memory_space<vmem>>, vector<1x1x8x8xbf16>,
    %64 = vector.extract_strided_slice %47 {offsets = [8, 0], sizes = [8, 8], strides = [1, 1]} : vector<32x8xbf16> to vector<8x8xbf16>
    %c0_35 = arith.constant 0 : index
    %c1 = arith.constant 1 : index
    %c0_36 = arith.constant 0 : index
    %c0_37 = arith.constant 0 : index
    %65 = vector.load %arg12[%c0_35, %c1, %c0_36, %c0_37] : memref<1x4x8x8xbf16, #tpu.memory_space<vmem>>, vector<1x1x8x8xbf16>
    %66 = vector.shape_cast %65 : vector<1x1x8x8xbf16> to vector<8x8xbf16>
    %67 = vector.shape_cast %64 : vector<8x8xbf16> to vector<1x1x8x8xbf16>
    tpu.vector_store %arg12[%c0_35, %c1, %c0_36, %c0_37], %67 {strides = array<i32>} : memref<1x4x8x8xbf16, #tpu.memory_space<vmem>>, vector<1x1x8x8xbf16>,
    %68 = vector.extract_strided_slice %55 {offsets = [0, 8], sizes = [8, 8], strides = [1, 1]} : vector<8x32xbf16> to vector<8x8xbf16>
    %c0_38 = arith.constant 0 : index
    %c1_39 = arith.constant 1 : index
    %c0_40 = arith.constant 0 : index
    %c0_41 = arith.constant 0 : index
    %69 = vector.load %arg13[%c0_38, %c1_39, %c0_40, %c0_41] : memref<1x4x8x8xbf16, #tpu.memory_space<vmem>>, vector<1x1x8x8xbf16>
    %70 = vector.shape_cast %69 : vector<1x1x8x8xbf16> to vector<8x8xbf16>
    %71 = vector.shape_cast %68 : vector<8x8xbf16> to vector<1x1x8x8xbf16>
    tpu.vector_store %arg13[%c0_38, %c1_39, %c0_40, %c0_41], %71 {strides = array<i32>} : memref<1x4x8x8xbf16, #tpu.memory_space<vmem>>, vector<1x1x8x8xbf16>,
    %72 = vector.extract_strided_slice %47 {offsets = [16, 0], sizes = [8, 8], strides = [1, 1]} : vector<32x8xbf16> to vector<8x8xbf16>
    %c0_42 = arith.constant 0 : index
    %c2 = arith.constant 2 : index
    %c0_43 = arith.constant 0 : index
    %c0_44 = arith.constant 0 : index
    %73 = vector.load %arg12[%c0_42, %c2, %c0_43, %c0_44] : memref<1x4x8x8xbf16, #tpu.memory_space<vmem>>, vector<1x1x8x8xbf16>
    %74 = vector.shape_cast %73 : vector<1x1x8x8xbf16> to vector<8x8xbf16>
    %75 = vector.shape_cast %72 : vector<8x8xbf16> to vector<1x1x8x8xbf16>
    tpu.vector_store %arg12[%c0_42, %c2, %c0_43, %c0_44], %75 {strides = array<i32>} : memref<1x4x8x8xbf16, #tpu.memory_space<vmem>>, vector<1x1x8x8xbf16>,
    %76 = vector.extract_strided_slice %55 {offsets = [0, 16], sizes = [8, 8], strides = [1, 1]} : vector<8x32xbf16> to vector<8x8xbf16>
    %c0_45 = arith.constant 0 : index
    %c2_46 = arith.constant 2 : index
    %c0_47 = arith.constant 0 : index
    %c0_48 = arith.constant 0 : index
    %77 = vector.load %arg13[%c0_45, %c2_46, %c0_47, %c0_48] : memref<1x4x8x8xbf16, #tpu.memory_space<vmem>>, vector<1x1x8x8xbf16>
    %78 = vector.shape_cast %77 : vector<1x1x8x8xbf16> to vector<8x8xbf16>
    %79 = vector.shape_cast %76 : vector<8x8xbf16> to vector<1x1x8x8xbf16>
    tpu.vector_store %arg13[%c0_45, %c2_46, %c0_47, %c0_48], %79 {strides = array<i32>} : memref<1x4x8x8xbf16, #tpu.memory_space<vmem>>, vector<1x1x8x8xbf16>,
    %80 = vector.extract_strided_slice %47 {offsets = [24, 0], sizes = [8, 8], strides = [1, 1]} : vector<32x8xbf16> to vector<8x8xbf16>
    %c0_49 = arith.constant 0 : index
    %c3 = arith.constant 3 : index
    %c0_50 = arith.constant 0 : index
    %c0_51 = arith.constant 0 : index
    %81 = vector.load %arg12[%c0_49, %c3, %c0_50, %c0_51] : memref<1x4x8x8xbf16, #tpu.memory_space<vmem>>, vector<1x1x8x8xbf16>
    %82 = vector.shape_cast %81 : vector<1x1x8x8xbf16> to vector<8x8xbf16>
    %83 = vector.shape_cast %80 : vector<8x8xbf16> to vector<1x1x8x8xbf16>
    tpu.vector_store %arg12[%c0_49, %c3, %c0_50, %c0_51], %83 {strides = array<i32>} : memref<1x4x8x8xbf16, #tpu.memory_space<vmem>>, vector<1x1x8x8xbf16>,
    %84 = vector.extract_strided_slice %55 {offsets = [0, 24], sizes = [8, 8], strides = [1, 1]} : vector<8x32xbf16> to vector<8x8xbf16>
    %c0_52 = arith.constant 0 : index
    %c3_53 = arith.constant 3 : index
    %c0_54 = arith.constant 0 : index
    %c0_55 = arith.constant 0 : index
    %85 = vector.load %arg13[%c0_52, %c3_53, %c0_54, %c0_55] : memref<1x4x8x8xbf16, #tpu.memory_space<vmem>>, vector<1x1x8x8xbf16>
    %86 = vector.shape_cast %85 : vector<1x1x8x8xbf16> to vector<8x8xbf16>
    %87 = vector.shape_cast %84 : vector<8x8xbf16> to vector<1x1x8x8xbf16>
    tpu.vector_store %arg13[%c0_52, %c3_53, %c0_54, %c0_55], %87 {strides = array<i32>} : memref<1x4x8x8xbf16, #tpu.memory_space<vmem>>, vector<1x1x8x8xbf16>,
    return
  }
  func.func @transform_0(%arg0: i32, %arg1: i32) -> (i32, i32, i32) {
    %c0_i32 = arith.constant 0 : i32
    %c0_i32_0 = arith.constant 0 : i32
    return %arg0, %arg1, %c0_i32 : i32, i32, i32
  }
  func.func @transform_1(%arg0: i32, %arg1: i32) -> (i32, i32) {
    %c0_i32 = arith.constant 0 : i32
    %c0_i32_0 = arith.constant 0 : i32
    return %arg1, %c0_i32 : i32, i32
  }
  func.func @transform_2(%arg0: i32, %arg1: i32) -> (i32, i32) {
    %c0_i32 = arith.constant 0 : i32
    %c0_i32_0 = arith.constant 0 : i32
    return %arg1, %c0_i32 : i32, i32
  }
  func.func @transform_3(%arg0: i32, %arg1: i32) -> (i32, i32) {
    %c0_i32 = arith.constant 0 : i32
    %c0_i32_0 = arith.constant 0 : i32
    %c0_i32_1 = arith.constant 0 : i32
    return %c0_i32, %c0_i32_0 : i32, i32
  }
  func.func @transform_4(%arg0: i32, %arg1: i32) -> (i32, i32) {
    %c0_i32 = arith.constant 0 : i32
    %c0_i32_0 = arith.constant 0 : i32
    %c0_i32_1 = arith.constant 0 : i32
    return %c0_i32, %c0_i32_0 : i32, i32
  }
  func.func @transform_5(%arg0: i32, %arg1: i32) -> (i32, i32) {
    %c0_i32 = arith.constant 0 : i32
    %c0_i32_0 = arith.constant 0 : i32
    %c0_i32_1 = arith.constant 0 : i32
    return %c0_i32, %c0_i32_0 : i32, i32
  }
  func.func @transform_6(%arg0: i32, %arg1: i32) -> (i32, i32) {
    %c0_i32 = arith.constant 0 : i32
    %c0_i32_0 = arith.constant 0 : i32
    %c0_i32_1 = arith.constant 0 : i32
    return %c0_i32, %c0_i32_0 : i32, i32
  }
  func.func @transform_7(%arg0: i32, %arg1: i32) -> (i32, i32) {
    %c0_i32 = arith.constant 0 : i32
    %c0_i32_0 = arith.constant 0 : i32
    %c0_i32_1 = arith.constant 0 : i32
    return %c0_i32, %c0_i32_0 : i32, i32
  }
  func.func @transform_8(%arg0: i32, %arg1: i32) -> (i32, i32) {
    %c0_i32 = arith.constant 0 : i32
    %c0_i32_0 = arith.constant 0 : i32
    %c0_i32_1 = arith.constant 0 : i32
    return %c0_i32, %c0_i32_0 : i32, i32
  }
  func.func @transform_9(%arg0: i32, %arg1: i32) -> (i32, i32, i32) {
    %c0_i32 = arith.constant 0 : i32
    %c0_i32_0 = arith.constant 0 : i32
    return %arg0, %arg1, %c0_i32 : i32, i32, i32
  }
  func.func @transform_10(%arg0: i32, %arg1: i32) -> (i32, i32, i32, i32) {
    %c0_i32 = arith.constant 0 : i32
    %c0_i32_0 = arith.constant 0 : i32
    %c0_i32_1 = arith.constant 0 : i32
    return %arg0, %c0_i32, %c0_i32_0, %arg1 : i32, i32, i32, i32
  }
  func.func @transform_11(%arg0: i32, %arg1: i32) -> (i32, i32, i32, i32) {
    %c0_i32 = arith.constant 0 : i32
    %c0_i32_0 = arith.constant 0 : i32
    %c0_i32_1 = arith.constant 0 : i32
    return %arg0, %c0_i32, %arg1, %c0_i32_0 : i32, i32, i32, i32
  }
}

</mosaic_0001>

<llo_original>
// kernel: tpu_custom_call.1
$region0: #{tpu_custom_call.1}
  #allocation0 [shape = 'u32[]', space=smem, size = 0x4, offset = 0x4, fixed_abs, tag = 'smem constant byte address 0x4 - core index']
  #allocation1 [shape = 'u32[144,128]{1,0:T(1,128)}', space=vmem, size = 0x12000, scoped, tag = 'internal scratch']
  %s0 = inlined_call_operand.hbm [shape: f32[8,128], index: 0, kind: input, shape index: {}]
  %s1 = inlined_call_operand.hbm [shape: f32[8,128], index: 1, kind: input, shape index: {}]
  %s2 = inlined_call_operand.hbm [shape: f32[8,128], index: 2, kind: output, shape index: {}]
  %s3 = sld [smem:[#allocation0]]
  $region26: #{tpu_custom_call.1} parent=0
    _
  %s5 = ssub.s32 1, %s3
  %s6 = scalar_select 0, %s5, %s3
  $region1: #{tpu_custom_call.1} parent=0
    #allocation2 [shape = 'u8[4096]{0}', space=vmem, size = 0x1000, scoped, tag = 'input window, operand 0, single buffered']
    #allocation3 [shape = 's32[1]{0}', space=sflag, size = 0x4, scoped, tag = 'scoped memory for tpu_custom_call.1']
    #allocation4 [shape = 's32[1]{0}', space=sflag, size = 0x4, scoped, tag = 'scoped memory for tpu_custom_call.1']
    #allocation5 [shape = 'u8[4096]{0}', space=vmem, size = 0x1000, scoped, tag = 'input window, operand 1, single buffered']
    #allocation6 [shape = 's32[1]{0}', space=sflag, size = 0x4, scoped, tag = 'scoped memory for tpu_custom_call.1']
    #allocation7 [shape = 'u8[4096]{0}', space=vmem, size = 0x1000, scoped, tag = 'output window, operand 0, single buffered']
    %7 = vsyncpa [#allocation3], 0
    %8 = vsyncpa [#allocation6], 0
    %9 = vsyncpa [#allocation4], 0
    // Predicated region
    $region2: #{tpu_custom_call.1} parent=1 // pred_check
      _
    $region3: #{tpu_custom_call.1} parent=1 // pred_check_branch
      %11 = sbr.rel (0) target = $region5
    $region4: #{tpu_custom_call.1} parent=1 // pred_region
      %s13 = ssub.s32 128, 128
      %14 = vsyncadd [#allocation3], %s13
      %s16 = sshll.u32 [#allocation2], 4
      %s17 = int_to_ptr.vmem [resolvable:$true] %s16
      %19 = dma.hbm_to_vmem [thread:$0]  %s0, 128, %s17, [#allocation3]
    $region5: #{tpu_custom_call.1} parent=1 // pred_fallthru
      _
    // Predicated region
    $region6: #{tpu_custom_call.1} parent=1 // pred_check
      _
    $region7: #{tpu_custom_call.1} parent=1 // pred_check_branch
      %21 = sbr.rel (0) target = $region9
    $region8: #{tpu_custom_call.1} parent=1 // pred_region
      %s23 = ssub.s32 128, 128
      %24 = vsyncadd [#allocation6], %s23
      %s26 = sshll.u32 [#allocation5], 4
      %s27 = int_to_ptr.vmem [resolvable:$true] %s26
      %29 = dma.hbm_to_vmem [thread:$0]  %s1, 128, %s27, [#allocation6]
    $region9: #{tpu_custom_call.1} parent=1 // pred_fallthru
      _
    // Predicated region
    $region10: #{tpu_custom_call.1} parent=1 // pred_check
      _
    $region11: #{tpu_custom_call.1} parent=1 // pred_check_branch
      %31 = sbr.rel (0) target = $region13
    $region12: #{tpu_custom_call.1} parent=1 // pred_region
      %32 = dma.done [#allocation3], 128
    $region13: #{tpu_custom_call.1} parent=1 // pred_fallthru
      _
    // Predicated region
    $region14: #{tpu_custom_call.1} parent=1 // pred_check
      _
    $region15: #{tpu_custom_call.1} parent=1 // pred_check_branch
      %34 = sbr.rel (0) target = $region17
    $region16: #{tpu_custom_call.1} parent=1 // pred_region
      %35 = dma.done [#allocation6], 128
    $region17: #{tpu_custom_call.1} parent=1 // pred_fallthru
      _
    %v36 = vld [vmem:[#allocation2] sm:$0xff]
    %v37 = vld [vmem:[#allocation5] sm:$0xff]
    %v38 = vadd.f32 %v36, %v37
    %39 = vst [vmem:[#allocation7] sm:$0xff] %v38
    // Predicated region
    $region18: #{tpu_custom_call.1} parent=1 // pred_check
      _
    $region19: #{tpu_custom_call.1} parent=1 // pred_check_branch
      %41 = sbr.rel (0) target = $region21
    $region20: #{tpu_custom_call.1} parent=1 // pred_region
      %s43 = ssub.s32 128, 128
      %44 = vsyncadd [#allocation4], %s43
      %s46 = sshll.u32 [#allocation7], 4
      %s47 = int_to_ptr.vmem [resolvable:$true] %s46
      %49 = dma.vmem_to_hbm [thread:$0]  %s47, 128, %s2, [#allocation4]
    $region21: #{tpu_custom_call.1} parent=1 // pred_fallthru
      _
    // Predicated region
    $region22: #{tpu_custom_call.1} parent=1 // pred_check
      _
    $region23: #{tpu_custom_call.1} parent=1 // pred_check_branch
      %51 = sbr.rel (0) target = $region25
    $region24: #{tpu_custom_call.1} parent=1 // pred_region
      %52 = dma.done [#allocation4], 128
    $region25: #{tpu_custom_call.1} parent=1 // pred_fallthru
      _
    %53 = vsyncpa [#allocation3], 1
    %54 = vsyncpa [#allocation6], 1
    %55 = vsyncpa [#allocation4], 1

// kernel: tpu_custom_call.1
$region0: #{tpu_custom_call.1}
  #allocation0 [shape = 'u32[]', space=smem, size = 0x4, offset = 0x4, fixed_abs, tag = 'smem constant byte address 0x4 - core index']
  #allocation1 [shape = 'u32[144,128]{1,0:T(1,128)}', space=vmem, size = 0x12000, scoped, tag = 'internal scratch']
  %s0 = inlined_call_operand.hbm [shape: f32[2,8,32], index: 0, kind: input, shape index: {}]
  %s1 = inlined_call_operand.hbm [shape: f32[8,32], index: 1, kind: input, shape index: {}]
  %s2 = inlined_call_operand.hbm [shape: f32[8,32], index: 2, kind: input, shape index: {}]
  %s3 = inlined_call_operand.hbm [shape: f32[1,32], index: 3, kind: input, shape index: {}]
  %s4 = inlined_call_operand.hbm [shape: f32[1,32], index: 4, kind: input, shape index: {}]
  %s5 = inlined_call_operand.hbm [shape: bf16[32,32], index: 5, kind: input, shape index: {}]
  %s6 = inlined_call_operand.hbm [shape: f32[32,1], index: 6, kind: input, shape index: {}]
  %s7 = inlined_call_operand.hbm [shape: bf16[32,32], index: 7, kind: input, shape index: {}]
  %s8 = inlined_call_operand.hbm [shape: f32[1,32], index: 8, kind: input, shape index: {}]
  %s9 = inlined_call_operand.hbm [shape: f32[2,8,32], index: 9, kind: output, shape index: {0}]
  %s10 = inlined_call_operand.hbm [shape: bf16[2,4,8,8], index: 10, kind: output, shape index: {1}]
  %s11 = inlined_call_operand.hbm [shape: bf16[2,4,8,8], index: 11, kind: output, shape index: {2}]
  %12 = xla_tuple %s9, %s10, %s11
  %s13 = sld [smem:[#allocation0]]
  $region121: #{tpu_custom_call.1} parent=0
    _
  %s15 = ssub.s32 1, %s13
  %s16 = scalar_select 0, %s15, %s13
  $region1: #{tpu_custom_call.1} parent=0
    #allocation2 [shape = 'u8[8192]{0}', space=vmem, size = 0x2000, scoped, tag = 'input window, operand 0']
    #allocation3 [shape = 's32[2]{0}', space=sflag, size = 0x8, scoped, tag = 'scoped memory for tpu_custom_call.1']
    #allocation4 [shape = 's32[2]{0}', space=sflag, size = 0x8, scoped, tag = 'scoped memory for tpu_custom_call.1']
    #allocation5 [shape = 'u8[4096]{0}', space=vmem, size = 0x1000, scoped, tag = 'input window, operand 1, single buffered']
    #allocation6 [shape = 's32[1]{0}', space=sflag, size = 0x4, scoped, tag = 'scoped memory for tpu_custom_call.1']
    #allocation7 [shape = 'u8[4096]{0}', space=vmem, size = 0x1000, scoped, tag = 'input window, operand 2, single buffered']
    #allocation8 [shape = 'u8[512]{0}', space=vmem, size = 0x400, scoped, tag = 'input window, operand 3, single buffered']
    #allocation9 [shape = 's32[1]{0}', space=sflag, size = 0x4, scoped, tag = 'scoped memory for tpu_custom_call.1']
    #allocation10 [shape = 'u8[512]{0}', space=vmem, size = 0x400, scoped, tag = 'input window, operand 4, single buffered']
    #allocation11 [shape = 'u8[8192]{0}', space=vmem, size = 0x2000, scoped, tag = 'input window, operand 5, single buffered']
    #allocation12 [shape = 's32[1]{0}', space=sflag, size = 0x4, scoped, tag = 'scoped memory for tpu_custom_call.1']
    #allocation13 [shape = 'u8[16384]{0}', space=vmem, size = 0x4000, scoped, tag = 'input window, operand 6, single buffered']
    #allocation14 [shape = 'u8[8192]{0}', space=vmem, size = 0x2000, scoped, tag = 'input window, operand 7, single buffered']
    #allocation15 [shape = 's32[1]{0}', space=sflag, size = 0x4, scoped, tag = 'scoped memory for tpu_custom_call.1']
    #allocation16 [shape = 'u8[512]{0}', space=vmem, size = 0x400, scoped, tag = 'input window, operand 8, single buffered']
    #allocation17 [shape = 'u8[8192]{0}', space=vmem, size = 0x2000, scoped, tag = 'output window, operand 0']
    #allocation18 [shape = 'u8[16384]{0}', space=vmem, size = 0x4000, scoped, tag = 'output window, operand 1']
    #allocation19 [shape = 's32[2]{0}', space=sflag, size = 0x8, scoped, tag = 'scoped memory for tpu_custom_call.1']
    #allocation20 [shape = 'u8[16384]{0}', space=vmem, size = 0x4000, scoped, tag = 'output window, operand 2']
    %17 = vsyncpa [#allocation3], 0
    %s18 = scalar_lea.sflag [#allocation3], 1
    %19 = vsyncpa %s18, 0
    %20 = vsyncpa [#allocation6], 0
    %21 = vsyncpa [#allocation9], 0
    %22 = vsyncpa [#allocation12], 0
    %23 = vsyncpa [#allocation15], 0
    %24 = vsyncpa [#allocation4], 0
    %s25 = scalar_lea.sflag [#allocation4], 1
    %26 = vsyncpa %s25, 0
    %27 = vsyncpa [#allocation19], 0
    %s28 = scalar_lea.sflag [#allocation19], 1
    %29 = vsyncpa %s28, 0
    loop: start=0, step=1, limit=4
    $region2: #{tpu_custom_call.1} parent=1 // loop_pre_header
      _
    $region3: #{tpu_custom_call.1} parent=1 // loop_header
      %s31 = sphi 0, %s35
      %p32 = scmp.ge.s32.totalorder %s31, 4
      %s38 = sphi 0, %s50
      %s39 = sphi 0, %s46
      %s40 = sphi 0, %s38
      %s41 = sphi 0, %s39
      %s42 = sphi 0, %s40
      %s43 = sphi 0, %s41
      %s55 = sphi 0, %s57
      %s58 = sphi 0, %s55
      %s59 = sphi 0, %s58
      %s75 = sphi 0, %s59
      %s81 = sphi 0, %s83
      %s84 = sphi 0, %s81
      %s85 = sphi 0, %s84
      %s101 = sphi 0, %s85
      %s107 = sphi 0, %s109
      %s110 = sphi 0, %s107
      %s111 = sphi 0, %s110
      %s127 = sphi 0, %s111
      %s131 = sphi 0, %s131
      %s133 = sphi 0, %s131
      %s134 = sphi 0, %s133
      %s148 = sphi 0, %s134
      %s152 = sphi 0, %s152
      %s154 = sphi 0, %s152
      %s155 = sphi 0, %s154
      %s169 = sphi 0, %s155
      %s173 = sphi 0, %s173
      %s175 = sphi 0, %s173
      %s176 = sphi 0, %s175
      %s190 = sphi 0, %s176
      %s194 = sphi 0, %s194
      %s196 = sphi 0, %s194
      %s197 = sphi 0, %s196
      %s211 = sphi 0, %s197
      %s215 = sphi 0, %s215
      %s217 = sphi 0, %s215
      %s218 = sphi 0, %s217
      %s232 = sphi 0, %s218
      %s236 = sphi 0, %s236
      %s238 = sphi 0, %s236
      %s239 = sphi 0, %s238
      %s253 = sphi 0, %s239
      %s261 = sphi 0, %s263
      %s264 = sphi 0, %s261
      %s265 = sphi 0, %s264
      %s281 = sphi 0, %s265
      %s289 = sphi 0, %s291
      %s292 = sphi 0, %s289
      %s293 = sphi 0, %s292
      %s309 = sphi 0, %s293
      %s317 = sphi 0, %s319
      %s320 = sphi 0, %s317
      %s321 = sphi 0, %s320
      %s337 = sphi 0, %s321
    $region4: #{tpu_custom_call.1} parent=1 // loop_header_branch
      %34 = sbr.rel (%p32) target = $region8
    $region5: #{tpu_custom_call.1} parent=1 // loop_body
      %s36 = ssub.s32 %s31, 1
      %s37 = ssub.s32 %s31, 2
      %s44 = sadd.s32 1, %s39
      %p45 = scmp.ge.s32.totalorder %s44, 1
      %s46 = scalar_select %p45, 0, %s44
      %s47 = sadd.s32 1, %s38
      %s48 = scalar_select %p45, %s47, %s38
      %p49 = scmp.ge.s32.totalorder %s48, 2
      %s50 = scalar_select %p49, 0, %s48
      %s51 = ssub.s32 %s38, %s50
      %s52 = ssub.s32 %s39, %s46
      %s53 = sor.u32 %s51, %s52
      %p54 = scmp.eq.s32.totalorder %s53, 0
      %s56 = sadd.s32 %s55, 1
      %s57 = scalar_select %p54, %s55, %s56
      %p60 = pneg %p54
      %p61 = scmp.eq.s32.totalorder %s31, 1
      %p62 = por %p60, %p61
      %p63 = scmp.ne.s32.totalorder %s55, %s58
      %p64 = scmp.eq.s32.totalorder %s31, 0
      %p65 = por %p63, %p64
      %p66 = scmp.ne.s32.totalorder %s55, %s58
      %p67 = scmp.eq.s32.totalorder %s36, 1
      %p68 = por %p66, %p67
      %p69 = scmp.ne.s32.totalorder %s58, %s59
      %p70 = scmp.eq.s32.totalorder %s36, 0
      %p71 = por %p69, %p70
      %p72 = scmp.ne.s32.totalorder %s58, %s59
      %p73 = scmp.eq.s32.totalorder %s37, 1
      %p74 = por %p72, %p73
      %p76 = scmp.ne.s32.totalorder %s59, %s75
      %p77 = scmp.eq.s32.totalorder %s37, 0
      %p78 = por %p76, %p77
      %s79 = ssub.s32 %s39, %s46
      %p80 = scmp.eq.s32.totalorder %s79, 0
      %s82 = sadd.s32 %s81, 1
      %s83 = scalar_select %p80, %s81, %s82
      %p86 = pneg %p80
      %p87 = scmp.eq.s32.totalorder %s31, 1
      %p88 = por %p86, %p87
      %p89 = scmp.ne.s32.totalorder %s81, %s84
      %p90 = scmp.eq.s32.totalorder %s31, 0
      %p91 = por %p89, %p90
      %p92 = scmp.ne.s32.totalorder %s81, %s84
      %p93 = scmp.eq.s32.totalorder %s36, 1
      %p94 = por %p92, %p93
      %p95 = scmp.ne.s32.totalorder %s84, %s85
      %p96 = scmp.eq.s32.totalorder %s36, 0
      %p97 = por %p95, %p96
      %p98 = scmp.ne.s32.totalorder %s84, %s85
      %p99 = scmp.eq.s32.totalorder %s37, 1
      %p100 = por %p98, %p99
      %p102 = scmp.ne.s32.totalorder %s85, %s101
      %p103 = scmp.eq.s32.totalorder %s37, 0
      %p104 = por %p102, %p103
      %s105 = ssub.s32 %s39, %s46
      %p106 = scmp.eq.s32.totalorder %s105, 0
      %s108 = sadd.s32 %s107, 1
      %s109 = scalar_select %p106, %s107, %s108
      %p112 = pneg %p106
      %p113 = scmp.eq.s32.totalorder %s31, 1
      %p114 = por %p112, %p113
      %p115 = scmp.ne.s32.totalorder %s107, %s110
      %p116 = scmp.eq.s32.totalorder %s31, 0
      %p117 = por %p115, %p116
      %p118 = scmp.ne.s32.totalorder %s107, %s110
      %p119 = scmp.eq.s32.totalorder %s36, 1
      %p120 = por %p118, %p119
      %p121 = scmp.ne.s32.totalorder %s110, %s111
      %p122 = scmp.eq.s32.totalorder %s36, 0
      %p123 = por %p121, %p122
      %p124 = scmp.ne.s32.totalorder %s110, %s111
      %p125 = scmp.eq.s32.totalorder %s37, 1
      %p126 = por %p124, %p125
      %p128 = scmp.ne.s32.totalorder %s111, %s127
      %p129 = scmp.eq.s32.totalorder %s37, 0
      %p130 = por %p128, %p129
      %s132 = sadd.s32 %s131, 1
      %p135 = scmp.eq.s32.totalorder %s31, 1
      %p136 = scmp.ne.s32.totalorder %s131, %s133
      %p137 = scmp.eq.s32.totalorder %s31, 0
      %p138 = por %p136, %p137
      %p139 = scmp.ne.s32.totalorder %s131, %s133
      %p140 = scmp.eq.s32.totalorder %s36, 1
      %p141 = por %p139, %p140
      %p142 = scmp.ne.s32.totalorder %s133, %s134
      %p143 = scmp.eq.s32.totalorder %s36, 0
      %p144 = por %p142, %p143
      %p145 = scmp.ne.s32.totalorder %s133, %s134
      %p146 = scmp.eq.s32.totalorder %s37, 1
      %p147 = por %p145, %p146
      %p149 = scmp.ne.s32.totalorder %s134, %s148
      %p150 = scmp.eq.s32.totalorder %s37, 0
      %p151 = por %p149, %p150
      %s153 = sadd.s32 %s152, 1
      %p156 = scmp.eq.s32.totalorder %s31, 1
      %p157 = scmp.ne.s32.totalorder %s152, %s154
      %p158 = scmp.eq.s32.totalorder %s31, 0
      %p159 = por %p157, %p158
      %p160 = scmp.ne.s32.totalorder %s152, %s154
      %p161 = scmp.eq.s32.totalorder %s36, 1
      %p162 = por %p160, %p161
      %p163 = scmp.ne.s32.totalorder %s154, %s155
      %p164 = scmp.eq.s32.totalorder %s36, 0
      %p165 = por %p163, %p164
      %p166 = scmp.ne.s32.totalorder %s154, %s155
      %p167 = scmp.eq.s32.totalorder %s37, 1
      %p168 = por %p166, %p167
      %p170 = scmp.ne.s32.totalorder %s155, %s169
      %p171 = scmp.eq.s32.totalorder %s37, 0
      %p172 = por %p170, %p171
      %s174 = sadd.s32 %s173, 1
      %p177 = scmp.eq.s32.totalorder %s31, 1
      %p178 = scmp.ne.s32.totalorder %s173, %s175
      %p179 = scmp.eq.s32.totalorder %s31, 0
      %p180 = por %p178, %p179
      %p181 = scmp.ne.s32.totalorder %s173, %s175
      %p182 = scmp.eq.s32.totalorder %s36, 1
      %p183 = por %p181, %p182
      %p184 = scmp.ne.s32.totalorder %s175, %s176
      %p185 = scmp.eq.s32.totalorder %s36, 0
      %p186 = por %p184, %p185
      %p187 = scmp.ne.s32.totalorder %s175, %s176
      %p188 = scmp.eq.s32.totalorder %s37, 1
      %p189 = por %p187, %p188
      %p191 = scmp.ne.s32.totalorder %s176, %s190
      %p192 = scmp.eq.s32.totalorder %s37, 0
      %p193 = por %p191, %p192
      %s195 = sadd.s32 %s194, 1
      %p198 = scmp.eq.s32.totalorder %s31, 1
      %p199 = scmp.ne.s32.totalorder %s194, %s196
      %p200 = scmp.eq.s32.totalorder %s31, 0
      %p201 = por %p199, %p200
      %p202 = scmp.ne.s32.totalorder %s194, %s196
      %p203 = scmp.eq.s32.totalorder %s36, 1
      %p204 = por %p202, %p203
      %p205 = scmp.ne.s32.totalorder %s196, %s197
      %p206 = scmp.eq.s32.totalorder %s36, 0
      %p207 = por %p205, %p206
      %p208 = scmp.ne.s32.totalorder %s196, %s197
      %p209 = scmp.eq.s32.totalorder %s37, 1
      %p210 = por %p208, %p209
      %p212 = scmp.ne.s32.totalorder %s197, %s211
      %p213 = scmp.eq.s32.totalorder %s37, 0
      %p214 = por %p212, %p213
      %s216 = sadd.s32 %s215, 1
      %p219 = scmp.eq.s32.totalorder %s31, 1
      %p220 = scmp.ne.s32.totalorder %s215, %s217
      %p221 = scmp.eq.s32.totalorder %s31, 0
      %p222 = por %p220, %p221
      %p223 = scmp.ne.s32.totalorder %s215, %s217
      %p224 = scmp.eq.s32.totalorder %s36, 1
      %p225 = por %p223, %p224
      %p226 = scmp.ne.s32.totalorder %s217, %s218
      %p227 = scmp.eq.s32.totalorder %s36, 0
      %p228 = por %p226, %p227
      %p229 = scmp.ne.s32.totalorder %s217, %s218
      %p230 = scmp.eq.s32.totalorder %s37, 1
      %p231 = por %p229, %p230
      %p233 = scmp.ne.s32.totalorder %s218, %s232
      %p234 = scmp.eq.s32.totalorder %s37, 0
      %p235 = por %p233, %p234
      %s237 = sadd.s32 %s236, 1
      %p240 = scmp.eq.s32.totalorder %s31, 1
      %p241 = scmp.ne.s32.totalorder %s236, %s238
      %p242 = scmp.eq.s32.totalorder %s31, 0
      %p243 = por %p241, %p242
      %p244 = scmp.ne.s32.totalorder %s236, %s238
      %p245 = scmp.eq.s32.totalorder %s36, 1
      %p246 = por %p244, %p245
      %p247 = scmp.ne.s32.totalorder %s238, %s239
      %p248 = scmp.eq.s32.totalorder %s36, 0
      %p249 = por %p247, %p248
      %p250 = scmp.ne.s32.totalorder %s238, %s239
      %p251 = scmp.eq.s32.totalorder %s37, 1
      %p252 = por %p250, %p251
      %p254 = scmp.ne.s32.totalorder %s239, %s253
      %p255 = scmp.eq.s32.totalorder %s37, 0
      %p256 = por %p254, %p255
      %s257 = ssub.s32 %s38, %s50
      %s258 = ssub.s32 %s39, %s46
      %s259 = sor.u32 %s257, %s258
      %p260 = scmp.eq.s32.totalorder %s259, 0
      %s262 = sadd.s32 %s261, 1
      %s263 = scalar_select %p260, %s261, %s262
      %p266 = pneg %p260
      %p267 = scmp.eq.s32.totalorder %s31, 1
      %p268 = por %p266, %p267
      %p269 = scmp.ne.s32.totalorder %s261, %s264
      %p270 = scmp.eq.s32.totalorder %s31, 0
      %p271 = por %p269, %p270
      %p272 = scmp.ne.s32.totalorder %s261, %s264
      %p273 = scmp.eq.s32.totalorder %s36, 1
      %p274 = por %p272, %p273
      %p275 = scmp.ne.s32.totalorder %s264, %s265
      %p276 = scmp.eq.s32.totalorder %s36, 0
      %p277 = por %p275, %p276
      %p278 = scmp.ne.s32.totalorder %s264, %s265
      %p279 = scmp.eq.s32.totalorder %s37, 1
      %p280 = por %p278, %p279
      %p282 = scmp.ne.s32.totalorder %s265, %s281
      %p283 = scmp.eq.s32.totalorder %s37, 0
      %p284 = por %p282, %p283
      %s285 = ssub.s32 %s38, %s50
      %s286 = ssub.s32 %s39, %s46
      %s287 = sor.u32 %s285, %s286
      %p288 = scmp.eq.s32.totalorder %s287, 0
      %s290 = sadd.s32 %s289, 1
      %s291 = scalar_select %p288, %s289, %s290
      %p294 = pneg %p288
      %p295 = scmp.eq.s32.totalorder %s31, 1
      %p296 = por %p294, %p295
      %p297 = scmp.ne.s32.totalorder %s289, %s292
      %p298 = scmp.eq.s32.totalorder %s31, 0
      %p299 = por %p297, %p298
      %p300 = scmp.ne.s32.totalorder %s289, %s292
      %p301 = scmp.eq.s32.totalorder %s36, 1
      %p302 = por %p300, %p301
      %p303 = scmp.ne.s32.totalorder %s292, %s293
      %p304 = scmp.eq.s32.totalorder %s36, 0
      %p305 = por %p303, %p304
      %p306 = scmp.ne.s32.totalorder %s292, %s293
      %p307 = scmp.eq.s32.totalorder %s37, 1
      %p308 = por %p306, %p307
      %p310 = scmp.ne.s32.totalorder %s293, %s309
      %p311 = scmp.eq.s32.totalorder %s37, 0
      %p312 = por %p310, %p311
      %s313 = ssub.s32 %s38, %s50
      %s314 = ssub.s32 %s39, %s46
      %s315 = sor.u32 %s313, %s314
      %p316 = scmp.eq.s32.totalorder %s315, 0
      %s318 = sadd.s32 %s317, 1
      %s319 = scalar_select %p316, %s317, %s318
      %p322 = pneg %p316
      %p323 = scmp.eq.s32.totalorder %s31, 1
      %p324 = por %p322, %p323
      %p325 = scmp.ne.s32.totalorder %s317, %s320
      %p326 = scmp.eq.s32.totalorder %s31, 0
      %p327 = por %p325, %p326
      %p328 = scmp.ne.s32.totalorder %s317, %s320
      %p329 = scmp.eq.s32.totalorder %s36, 1
      %p330 = por %p328, %p329
      %p331 = scmp.ne.s32.totalorder %s320, %s321
      %p332 = scmp.eq.s32.totalorder %s36, 0
      %p333 = por %p331, %p332
      %p334 = scmp.ne.s32.totalorder %s320, %s321
      %p335 = scmp.eq.s32.totalorder %s37, 1
      %p336 = por %p334, %p335
      %p338 = scmp.ne.s32.totalorder %s321, %s337
      %p339 = scmp.eq.s32.totalorder %s37, 0
      %p340 = por %p338, %p339
      %p341 = scmp.le.s32.totalorder 1, %s31
      %p342 = scmp.lt.s32.totalorder %s31, 3
      %p343 = pnand %p341, %p342
      %p344 = pneg %p343
      // Predicated region
      $region9: #{tpu_custom_call.1} parent=5 // pred_check
        _
      $region10: #{tpu_custom_call.1} parent=5 // pred_check_branch
        %346 = sbr.rel (%p343) target = $region12
      $region11: #{tpu_custom_call.1} parent=5 // pred_region
        %s347 = ssub.s32 %s31, 1
        // Predicated region
        $region13: #{tpu_custom_call.1} parent=11 // pred_check
          %p348 = pneg %p97
        $region14: #{tpu_custom_call.1} parent=11 // pred_check_branch
          %350 = sbr.rel (%p348) target = $region16
        $region15: #{tpu_custom_call.1} parent=11 // pred_region
          %s352 = ssub.s32 128, 128
          %353 = vsyncadd [#allocation6], %s352
          %s354 = smul.addr %s41, 128
          %s355 = scalar_lea.hbm %s1, %s354
          %s357 = sshll.u32 [#allocation5], 4
          %s358 = int_to_ptr.vmem [resolvable:$true] %s357
          %360 = dma.hbm_to_vmem [thread:$0]  %s355, 128, %s358, [#allocation6]
        $region16: #{tpu_custom_call.1} parent=11 // pred_fallthru
          _
        // Predicated region
        $region17: #{tpu_custom_call.1} parent=11 // pred_check
          %p361 = pneg %p123
        $region18: #{tpu_custom_call.1} parent=11 // pred_check_branch
          %363 = sbr.rel (%p361) target = $region20
        $region19: #{tpu_custom_call.1} parent=11 // pred_region
          %s365 = ssub.s32 128, 128
          %366 = vsyncadd [#allocation6], %s365
          %s367 = smul.addr %s41, 128
          %s368 = scalar_lea.hbm %s2, %s367
          %s370 = sshll.u32 [#allocation7], 4
          %s371 = int_to_ptr.vmem [resolvable:$true] %s370
          %373 = dma.hbm_to_vmem [thread:$0]  %s368, 128, %s371, [#allocation6]
        $region20: #{tpu_custom_call.1} parent=11 // pred_fallthru
          _
        // Predicated region
        $region21: #{tpu_custom_call.1} parent=11 // pred_check
          %p374 = pneg %p144
        $region22: #{tpu_custom_call.1} parent=11 // pred_check_branch
          %376 = sbr.rel (%p374) target = $region24
        $region23: #{tpu_custom_call.1} parent=11 // pred_region
          %s378 = ssub.s32 16, 16
          %379 = vsyncadd [#allocation9], %s378
          %s381 = sshll.u32 [#allocation8], 4
          %s382 = int_to_ptr.vmem [resolvable:$true] %s381
          %384 = dma.hbm_to_vmem [thread:$0]  %s3, 16, %s382, [#allocation9]
        $region24: #{tpu_custom_call.1} parent=11 // pred_fallthru
          _
        // Predicated region
        $region25: #{tpu_custom_call.1} parent=11 // pred_check
          %p385 = pneg %p165
        $region26: #{tpu_custom_call.1} parent=11 // pred_check_branch
          %387 = sbr.rel (%p385) target = $region28
        $region27: #{tpu_custom_call.1} parent=11 // pred_region
          %s389 = ssub.s32 16, 16
          %390 = vsyncadd [#allocation9], %s389
          %s392 = sshll.u32 [#allocation10], 4
          %s393 = int_to_ptr.vmem [resolvable:$true] %s392
          %395 = dma.hbm_to_vmem [thread:$0]  %s4, 16, %s393, [#allocation9]
        $region28: #{tpu_custom_call.1} parent=11 // pred_fallthru
          _
        // Predicated region
        $region29: #{tpu_custom_call.1} parent=11 // pred_check
          %p396 = pneg %p186
        $region30: #{tpu_custom_call.1} parent=11 // pred_check_branch
          %398 = sbr.rel (%p396) target = $region32
        $region31: #{tpu_custom_call.1} parent=11 // pred_region
          %s400 = ssub.s32 256, 256
          %401 = vsyncadd [#allocation12], %s400
          %s402 = sshll.u32 [#allocation11], 4
          %s403 = int_to_ptr.vmem [resolvable:$true] %s402
          %408 = dma.hbm_to_vmem [thread:$0]  %s5, 256, %s403, [#allocation12], 64, 64, 4
        $region32: #{tpu_custom_call.1} parent=11 // pred_fallthru
          _
        // Predicated region
        $region33: #{tpu_custom_call.1} parent=11 // pred_check
          %p409 = pneg %p207
        $region34: #{tpu_custom_call.1} parent=11 // pred_check_branch
          %411 = sbr.rel (%p409) target = $region36
        $region35: #{tpu_custom_call.1} parent=11 // pred_region
          %s413 = ssub.s32 512, 512
          %414 = vsyncadd [#allocation12], %s413
          %s415 = sshll.u32 [#allocation13], 4
          %s416 = int_to_ptr.vmem [resolvable:$true] %s415
          %421 = dma.hbm_to_vmem [thread:$0]  %s6, 512, %s416, [#allocation12], 128, 128, 8
        $region36: #{tpu_custom_call.1} parent=11 // pred_fallthru
          _
        // Predicated region
        $region37: #{tpu_custom_call.1} parent=11 // pred_check
          %p422 = pneg %p228
        $region38: #{tpu_custom_call.1} parent=11 // pred_check_branch
          %424 = sbr.rel (%p422) target = $region40
        $region39: #{tpu_custom_call.1} parent=11 // pred_region
          %s426 = ssub.s32 256, 256
          %427 = vsyncadd [#allocation15], %s426
          %s428 = sshll.u32 [#allocation14], 4
          %s429 = int_to_ptr.vmem [resolvable:$true] %s428
          %434 = dma.hbm_to_vmem [thread:$0]  %s7, 256, %s429, [#allocation15], 64, 64, 4
        $region40: #{tpu_custom_call.1} parent=11 // pred_fallthru
          _
        // Predicated region
        $region41: #{tpu_custom_call.1} parent=11 // pred_check
          %p435 = pneg %p249
        $region42: #{tpu_custom_call.1} parent=11 // pred_check_branch
          %437 = sbr.rel (%p435) target = $region44
        $region43: #{tpu_custom_call.1} parent=11 // pred_region
          %s439 = ssub.s32 16, 16
          %440 = vsyncadd [#allocation15], %s439
          %s442 = sshll.u32 [#allocation16], 4
          %s443 = int_to_ptr.vmem [resolvable:$true] %s442
          %445 = dma.hbm_to_vmem [thread:$0]  %s8, 16, %s443, [#allocation15]
        $region44: #{tpu_custom_call.1} parent=11 // pred_fallthru
          _
      $region12: #{tpu_custom_call.1} parent=5 // pred_fallthru
        _
      %p446 = scmp.lt.s32.totalorder %s31, 2
      // Predicated region
      $region45: #{tpu_custom_call.1} parent=5 // pred_check
        %p447 = pneg %p446
      $region46: #{tpu_custom_call.1} parent=5 // pred_check_branch
        %449 = sbr.rel (%p447) target = $region48
      $region47: #{tpu_custom_call.1} parent=5 // pred_region
        // Predicated region
        $region49: #{tpu_custom_call.1} parent=47 // pred_check
          %p450 = pneg %p65
        $region50: #{tpu_custom_call.1} parent=47 // pred_check_branch
          %452 = sbr.rel (%p450) target = $region52
        $region51: #{tpu_custom_call.1} parent=47 // pred_region
          %s453 = sand.u32 %s55, 1
          %s454 = scalar_lea.sflag [#allocation3], %s453
          %s455 = sand.u32 %s55, 1
          %s456 = smul.addr %s455, 8
          %s457 = scalar_lea.vmem [#allocation2], %s456
          %s459 = ssub.s32 128, 128
          %460 = vsyncadd %s454, %s459
          %s461 = sadd.s32 %s39, %s38
          %s462 = smul.addr %s461, 128
          %s463 = scalar_lea.hbm %s0, %s462
          %s465 = sshll.u32 %s457, 4
          %s466 = int_to_ptr.vmem [resolvable:$true] %s465
          %468 = dma.hbm_to_vmem [thread:$0]  %s463, 128, %s466, %s454
        $region52: #{tpu_custom_call.1} parent=47 // pred_fallthru
          _
      $region48: #{tpu_custom_call.1} parent=5 // pred_fallthru
        _
      %p469 = scmp.le.s32.totalorder 1, %s31
      %p470 = scmp.lt.s32.totalorder %s31, 3
      %p471 = pnand %p469, %p470
      %p472 = pneg %p471
      // Predicated region
      $region53: #{tpu_custom_call.1} parent=5 // pred_check
        _
      $region54: #{tpu_custom_call.1} parent=5 // pred_check_branch
        %474 = sbr.rel (%p471) target = $region56
      $region55: #{tpu_custom_call.1} parent=5 // pred_region
        %s475 = ssub.s32 %s31, 1
        %s476 = sand.u32 %s58, 1
        %s477 = scalar_lea.sflag [#allocation3], %s476
        %s478 = sand.u32 %s58, 1
        %s479 = smul.addr %s478, 8
        %s480 = scalar_lea.vmem [#allocation2], %s479
        // Predicated region
        $region57: #{tpu_custom_call.1} parent=55 // pred_check
          %p481 = pneg %p71
        $region58: #{tpu_custom_call.1} parent=55 // pred_check_branch
          %483 = sbr.rel (%p481) target = $region60
        $region59: #{tpu_custom_call.1} parent=55 // pred_region
          %484 = dma.done %s477, 128
        $region60: #{tpu_custom_call.1} parent=55 // pred_fallthru
          _
        // Predicated region
        $region61: #{tpu_custom_call.1} parent=55 // pred_check
          %p485 = pneg %p97
        $region62: #{tpu_custom_call.1} parent=55 // pred_check_branch
          %487 = sbr.rel (%p485) target = $region64
        $region63: #{tpu_custom_call.1} parent=55 // pred_region
          %488 = dma.done [#allocation6], 128
        $region64: #{tpu_custom_call.1} parent=55 // pred_fallthru
          _
        // Predicated region
        $region65: #{tpu_custom_call.1} parent=55 // pred_check
          %p489 = pneg %p123
        $region66: #{tpu_custom_call.1} parent=55 // pred_check_branch
          %491 = sbr.rel (%p489) target = $region68
        $region67: #{tpu_custom_call.1} parent=55 // pred_region
          %492 = dma.done [#allocation6], 128
        $region68: #{tpu_custom_call.1} parent=55 // pred_fallthru
          _
        // Predicated region
        $region69: #{tpu_custom_call.1} parent=55 // pred_check
          %p493 = pneg %p144
        $region70: #{tpu_custom_call.1} parent=55 // pred_check_branch
          %495 = sbr.rel (%p493) target = $region72
        $region71: #{tpu_custom_call.1} parent=55 // pred_region
          %496 = dma.done [#allocation9], 16
        $region72: #{tpu_custom_call.1} parent=55 // pred_fallthru
          _
        // Predicated region
        $region73: #{tpu_custom_call.1} parent=55 // pred_check
          %p497 = pneg %p165
        $region74: #{tpu_custom_call.1} parent=55 // pred_check_branch
          %499 = sbr.rel (%p497) target = $region76
        $region75: #{tpu_custom_call.1} parent=55 // pred_region
          %500 = dma.done [#allocation9], 16
        $region76: #{tpu_custom_call.1} parent=55 // pred_fallthru
          _
        // Predicated region
        $region77: #{tpu_custom_call.1} parent=55 // pred_check
          %p501 = pneg %p186
        $region78: #{tpu_custom_call.1} parent=55 // pred_check_branch
          %503 = sbr.rel (%p501) target = $region80
        $region79: #{tpu_custom_call.1} parent=55 // pred_region
          %504 = dma.done [#allocation12], 256
        $region80: #{tpu_custom_call.1} parent=55 // pred_fallthru
          _
        // Predicated region
        $region81: #{tpu_custom_call.1} parent=55 // pred_check
          %p505 = pneg %p207
        $region82: #{tpu_custom_call.1} parent=55 // pred_check_branch
          %507 = sbr.rel (%p505) target = $region84
        $region83: #{tpu_custom_call.1} parent=55 // pred_region
          %508 = dma.done [#allocation12], 512
        $region84: #{tpu_custom_call.1} parent=55 // pred_fallthru
          _
        // Predicated region
        $region85: #{tpu_custom_call.1} parent=55 // pred_check
          %p509 = pneg %p228
        $region86: #{tpu_custom_call.1} parent=55 // pred_check_branch
          %511 = sbr.rel (%p509) target = $region88
        $region87: #{tpu_custom_call.1} parent=55 // pred_region
          %512 = dma.done [#allocation15], 256
        $region88: #{tpu_custom_call.1} parent=55 // pred_fallthru
          _
        // Predicated region
        $region89: #{tpu_custom_call.1} parent=55 // pred_check
          %p513 = pneg %p249
        $region90: #{tpu_custom_call.1} parent=55 // pred_check_branch
          %515 = sbr.rel (%p513) target = $region92
        $region91: #{tpu_custom_call.1} parent=55 // pred_region
          %516 = dma.done [#allocation15], 16
        $region92: #{tpu_custom_call.1} parent=55 // pred_fallthru
          _
        %s517 = sand.u32 %s58, 1
        %s518 = scalar_lea.sflag [#allocation3], %s517
        %s519 = sand.u32 %s58, 1
        %s520 = smul.addr %s519, 8
        %s521 = scalar_lea.vmem [#allocation2], %s520
        %p522 = pneg %p71
        %p523 = pneg %p68
        %p524 = pneg %p97
        %p525 = pneg %p94
        %p526 = pneg %p123
        %p527 = pneg %p120
        %p528 = pneg %p144
        %p529 = pneg %p141
        %p530 = pneg %p165
        %p531 = pneg %p162
        %p532 = pneg %p186
        %p533 = pneg %p183
        %p534 = pneg %p207
        %p535 = pneg %p204
        %p536 = pneg %p228
        %p537 = pneg %p225
        %p538 = pneg %p249
        %p539 = pneg %p246
        %p540 = pneg %p277
        %p541 = pneg %p274
        %s542 = sand.u32 %s264, 1
        %s543 = scalar_lea.sflag [#allocation4], %s542
        %s544 = sand.u32 %s264, 1
        %s545 = smul.addr %s544, 8
        %s546 = scalar_lea.vmem [#allocation17], %s545
        %p547 = pneg %p305
        %p548 = pneg %p302
        %s549 = sand.u32 %s36, 1
        %s550 = scalar_lea.sflag [#allocation19], %s549
        %s551 = sand.u32 %s292, 1
        %s552 = smul.addr %s551, 16
        %s553 = scalar_lea.vmem [#allocation18], %s552
        %p554 = pneg %p333
        %p555 = pneg %p330
        %s556 = sand.u32 %s36, 1
        %s557 = scalar_lea.sflag [#allocation19], %s556
        %s558 = sand.u32 %s320, 1
        %s559 = smul.addr %s558, 16
        %s560 = scalar_lea.vmem [#allocation20], %s559
        %v562 = vld [vmem:[%s480] sm:$0xff]
        %564 = vrot.lane.b32.xlu0 %v562, 112
        %v565 = vpop.permute.xlu0 %564
        %567 = vrot.lane.b32.xlu0 %v562, 16
        %v568 = vpop.permute.xlu0 %567
        %vm570 = vcmask 130048
        %v571 = vsel %vm570, %v565, %v568
        %v572 = vld [vmem:[#allocation5] sm:$0xff]
        %v573 = vmul.f32 %v562, %v572
        %v574 = vld [vmem:[#allocation7] sm:$0xff]
        %v575 = vmul.f32 %v571, %v574
        %v576 = vadd.f32 %v573, %v575
        %vm577 = vcmask 261120
        %578 = vst.msk [vmem:[%s546] sm:$0xff] %vm577, %v576
        %v579 = vsel %vm577, %v576, 0.0
        %580 = vadd.xlane.f32.xlu0 %v579
        %v581 = vpop.xlane.xlu0 %580
        %v582 = vrcp.pop 32.0
        %v583 = vmul.f32 %v581, %v582
        %v584 = vsub.f32 %v576, %v583
        %v585 = vmul.f32 %v584, %v584
        %v586 = vsel %vm577, %v585, 0.0
        %587 = vadd.xlane.f32.xlu0 %v586
        %v588 = vpop.xlane.xlu0 %587
        %v589 = vmul.f32 %v588, %v582
        %v590 = vadd.f32 %v589, 1e-05
        %v591 = vrsqrt.pop %v590
        %v592 = vmul.f32 %v584, %v591
        %v593 = vld [vmem:[#allocation8] sm:$0x1]
        %v595 = vlaneseq
        %v596 = vshrl.u32 %v595, 7
        %v597 = vsub.s32 0, %v596
        %v598 = vrot.slane %v593, %v597
        %v600 = vmul.f32 %v592, %v598
        %v601 = vld [vmem:[#allocation10] sm:$0x1]
        %v603 = vlaneseq
        %v604 = vshrl.u32 %v603, 7
        %v605 = vsub.s32 0, %v604
        %v606 = vrot.slane %v601, %v605
        %v608 = vadd.f32 %v600, %v606
        %v609 = vpack.c.bf16 %v608, %v608
        %v610 = vld [vmem:[#allocation11] sm:$0xf]
        %v611 = vld [vmem:[#allocation11 + $0x4] sm:$0xf]
        %v612 = vld [vmem:[#allocation11 + $0x8] sm:$0xf]
        %v613 = vld [vmem:[#allocation11 + $0xc] sm:$0xf]
        %v614 = vld [vmem:[#allocation13] sm:$0xff]
        %v615 = vld [vmem:[#allocation13 + $0x8] sm:$0xff]
        %v616 = vld [vmem:[#allocation13 + $0x10] sm:$0xff]
        %v617 = vld [vmem:[#allocation13 + $0x18] sm:$0xff]
        %619 = vset.pattern.permute.xlu0 0
        %620 = vperm.xlu0 %619, %v614
        %v621 = vpop.permute.xlu0 %620
        %624 = vset.pattern.permute.xlu0 0
        %625 = vperm.xlu0 %624, %v615
        %v626 = vpop.permute.xlu0 %625
        %629 = vset.pattern.permute.xlu0 0
        %630 = vperm.xlu0 %629, %v616
        %v631 = vpop.permute.xlu0 %630
        %634 = vset.pattern.permute.xlu0 0
        %635 = vperm.xlu0 %634, %v617
        %v636 = vpop.permute.xlu0 %635
        %v642 = vunpack.c.l.b16 %v610
        %v643 = vunpack.c.l.b16 %v611
        %v644 = vunpack.c.l.b16 %v612
        %v645 = vunpack.c.l.b16 %v613
        %v646 = vpack.c.b16 %v643, %v642
        %v647 = vpack.c.b16 %v645, %v644
        %v649 = vsel %vm577, %v646, 0
        %v652 = vsel %vm577, %v647, 0
        %v655 = vsel %vm577, %v609, 0
        %657 = vmatprep.subr.bf16.mxu0 0
        %658 = vmatpush1.bf16.xpose.msra.mxu0 %v655
        %659 = vmatprep.subr.bf16.mxu0 0
        %660 = vmatpush1.bf16.xpose.msra.mxu0 0
        %661 = vmatprep.subr.bf16.mxu0 0
        %662 = vmatpush1.bf16.xpose.msra.mxu0 0
        %663 = vmatprep.subr.bf16.mxu0 0
        %664 = vmatpush1.bf16.xpose.msra.mxu0 0
        %665 = vmatprep.subr.bf16.mxu0 0
        %666 = vmatpush1.bf16.xpose.msra.mxu0 0
        %667 = vmatprep.subr.bf16.mxu0 0
        %668 = vmatpush1.bf16.xpose.msra.mxu0 0
        %669 = vmatprep.subr.bf16.mxu0 0
        %670 = vmatpush1.bf16.xpose.msra.mxu0 0
        %671 = vmatprep.subr.bf16.mxu0 0
        %672 = vmatpush1.bf16.xpose.msra.mxu0 0
        %673 = vmatprep.subr.bf16.mxu0 0
        %674 = vmatpush1.bf16.xpose.msra.mxu0 0
        %675 = vmatprep.subr.bf16.mxu0 0
        %676 = vmatpush1.bf16.xpose.msra.mxu0 0
        %677 = vmatprep.subr.bf16.mxu0 0
        %678 = vmatpush1.bf16.xpose.msra.mxu0 0
        %679 = vmatprep.subr.bf16.mxu0 0
        %680 = vmatpush1.bf16.xpose.msra.mxu0 0
        %681 = vmatprep.subr.bf16.mxu0 0
        %682 = vmatpush1.bf16.xpose.msra.mxu0 0
        %683 = vmatprep.subr.bf16.mxu0 0
        %684 = vmatpush1.bf16.xpose.msra.mxu0 0
        %685 = vmatprep.subr.bf16.mxu0 0
        %686 = vmatpush1.bf16.xpose.msra.mxu0 0
        %687 = vmatprep.subr.bf16.mxu0 0
        %688 = vmatpush1.bf16.xpose.msra.mxu0 0
        %689 = vmatprep.mubr.bf16.mxu0 0
        %690 = vmatmul.mubr.bf16.gmra.mrb[0].mxu0 %v649
        %v691 = vpop.f32.mrb[0].mxu0
        %v692 = vadd.f32 %v621, %v691
        %v693 = vpop.f32.mrb[0].mxu0
        %v694 = vpop.f32.mrb[0].mxu0
        %v695 = vadd.f32 %v626, %v694
        %v696 = vpop.f32.mrb[0].mxu0
        %697 = vmatprep.mubr.bf16.mxu0 0
        %698 = vmatmul.mubr.bf16.gmra.mrb[0].mxu0 %v652
        %v699 = vpop.f32.mrb[0].mxu0
        %v700 = vadd.f32 %v631, %v699
        %v701 = vpop.f32.mrb[0].mxu0
        %v702 = vpop.f32.mrb[0].mxu0
        %v703 = vadd.f32 %v636, %v702
        %v704 = vpop.f32.mrb[0].mxu0
        %705 = vdwg.mxu0
        %v706 = vpack.c.bf16 %v695, %v692
        %v707 = vpack.c.bf16 %v703, %v700
        %v708 = vld [vmem:[#allocation14] sm:$0xf]
        %v709 = vld [vmem:[#allocation14 + $0x4] sm:$0xf]
        %v710 = vld [vmem:[#allocation14 + $0x8] sm:$0xf]
        %v711 = vld [vmem:[#allocation14 + $0xc] sm:$0xf]
        %v712 = vld [vmem:[#allocation16] sm:$0x1]
        %v714 = vlaneseq
        %v715 = vshrl.u32 %v714, 7
        %v716 = vsub.s32 0, %v715
        %v717 = vrot.slane %v712, %v716
        %v723 = vunpack.c.l.b16 %v708
        %v724 = vunpack.c.l.b16 %v709
        %v725 = vunpack.c.l.b16 %v710
        %v726 = vunpack.c.l.b16 %v711
        %v727 = vpack.c.b16 %v724, %v723
        %v728 = vpack.c.b16 %v726, %v725
        %731 = vmatprep.subr.bf16.mxu0 0
        %732 = vmatpush1.bf16.msra.mxu0 %v727
        %733 = vmatprep.subr.bf16.mxu0 0
        %734 = vmatpush1.bf16.msra.mxu0 %v728
        %735 = vmatprep.subr.bf16.mxu0 0
        %736 = vmatpush1.bf16.msra.mxu0 0
        %737 = vmatprep.subr.bf16.mxu0 0
        %738 = vmatpush1.bf16.msra.mxu0 0
        %739 = vmatprep.subr.bf16.mxu0 0
        %740 = vmatpush1.bf16.msra.mxu0 0
        %741 = vmatprep.subr.bf16.mxu0 0
        %742 = vmatpush1.bf16.msra.mxu0 0
        %743 = vmatprep.subr.bf16.mxu0 0
        %744 = vmatpush1.bf16.msra.mxu0 0
        %745 = vmatprep.subr.bf16.mxu0 0
        %746 = vmatpush1.bf16.msra.mxu0 0
        %747 = vmatprep.subr.bf16.mxu0 0
        %748 = vmatpush1.bf16.msra.mxu0 0
        %749 = vmatprep.subr.bf16.mxu0 0
        %750 = vmatpush1.bf16.msra.mxu0 0
        %751 = vmatprep.subr.bf16.mxu0 0
        %752 = vmatpush1.bf16.msra.mxu0 0
        %753 = vmatprep.subr.bf16.mxu0 0
        %754 = vmatpush1.bf16.msra.mxu0 0
        %755 = vmatprep.subr.bf16.mxu0 0
        %756 = vmatpush1.bf16.msra.mxu0 0
        %757 = vmatprep.subr.bf16.mxu0 0
        %758 = vmatpush1.bf16.msra.mxu0 0
        %759 = vmatprep.subr.bf16.mxu0 0
        %760 = vmatpush1.bf16.msra.mxu0 0
        %761 = vmatprep.subr.bf16.mxu0 0
        %762 = vmatpush1.bf16.msra.mxu0 0
        %763 = vmatprep.mubr.bf16.mxu0 0
        %764 = vmatmul.mubr.bf16.gmra.mrb[0].mxu0 %v655
        %v765 = vpop.f32.mrb[0].mxu0
        %v766 = vadd.f32 %v717, %v765
        %v767 = vpop.f32.mrb[0].mxu0
        %v768 = vpop.f32.mrb[0].mxu0
        %v769 = vpop.f32.mrb[0].mxu0
        %770 = vdwg.mxu0
        %v771 = vpack.c.bf16 %v766, %v766
        %vm772 = vcmask 60416
        %773 = vst.msk [vmem:[%s553] sm:$0xf] %vm772, %v706
        %774 = vst.msk [vmem:[%s560] sm:$0xf] %vm772, %v771
        %v776 = vunpack.c.h.b16 %v706
        %v777 = vpack.c.b16 %v776, %v776
        %s779 = scalar_lea.vmem %s553, 4 [#allocation18]
        %780 = vst.msk [vmem:[%s779] sm:$0xf] %vm772, %v777
        %v782 = vunpack.c.l.b16 %v771
        %v783 = vpack.c.b16 %v782, %v782
        %784 = vrot.lane.b32.xlu0 %v783, 120
        %v785 = vpop.permute.xlu0 %784
        %s787 = scalar_lea.vmem %s560, 4 [#allocation20]
        %788 = vst.msk [vmem:[%s787] sm:$0xf] %vm772, %v785
        %s789 = scalar_lea.vmem %s553, 8 [#allocation18]
        %790 = vst.msk [vmem:[%s789] sm:$0xf] %vm772, %v707
        %791 = vrot.lane.b32.xlu0 %v783, 112
        %v792 = vpop.permute.xlu0 %791
        %s794 = scalar_lea.vmem %s560, 8 [#allocation20]
        %795 = vst.msk [vmem:[%s794] sm:$0xf] %vm772, %v792
        %v797 = vunpack.c.h.b16 %v707
        %v798 = vpack.c.b16 %v797, %v797
        %s800 = scalar_lea.vmem %s553, 12 [#allocation18]
        %801 = vst.msk [vmem:[%s800] sm:$0xf] %vm772, %v798
        %802 = vrot.lane.b32.xlu0 %v783, 104
        %v803 = vpop.permute.xlu0 %802
        %s805 = scalar_lea.vmem %s560, 12 [#allocation20]
        %806 = vst.msk [vmem:[%s805] sm:$0xf] %vm772, %v803
        %s807 = sand.u32 %s264, 1
        %s808 = scalar_lea.sflag [#allocation4], %s807
        %s809 = sand.u32 %s264, 1
        %s810 = smul.addr %s809, 8
        %s811 = scalar_lea.vmem [#allocation17], %s810
        %s812 = sand.u32 %s36, 1
        %s813 = scalar_lea.sflag [#allocation19], %s812
        %s814 = sand.u32 %s292, 1
        %s815 = smul.addr %s814, 16
        %s816 = scalar_lea.vmem [#allocation18], %s815
        %s817 = sand.u32 %s36, 1
        %s818 = scalar_lea.sflag [#allocation19], %s817
        %s819 = sand.u32 %s320, 1
        %s820 = smul.addr %s819, 16
        %s821 = scalar_lea.vmem [#allocation20], %s820
        // Predicated region
        $region93: #{tpu_custom_call.1} parent=55 // pred_check
          %p822 = pneg %p274
        $region94: #{tpu_custom_call.1} parent=55 // pred_check_branch
          %824 = sbr.rel (%p822) target = $region96
        $region95: #{tpu_custom_call.1} parent=55 // pred_region
          %s826 = ssub.s32 128, 128
          %827 = vsyncadd %s808, %s826
          %s828 = sadd.s32 %s41, %s40
          %s829 = smul.addr %s828, 128
          %s830 = scalar_lea.hbm %s9, %s829
          %s832 = sshll.u32 %s811, 4
          %s833 = int_to_ptr.vmem [resolvable:$true] %s832
          %835 = dma.vmem_to_hbm [thread:$0]  %s833, 128, %s830, %s808
        $region96: #{tpu_custom_call.1} parent=55 // pred_fallthru
          _
        // Predicated region
        $region97: #{tpu_custom_call.1} parent=55 // pred_check
          %p836 = pneg %p302
        $region98: #{tpu_custom_call.1} parent=55 // pred_check_branch
          %838 = sbr.rel (%p836) target = $region100
        $region99: #{tpu_custom_call.1} parent=55 // pred_region
          %s840 = ssub.s32 256, 256
          %841 = vsyncadd %s813, %s840
          %s842 = smul.addr %s40, 4
          %s843 = sadd.s32 %s41, %s842
          %s844 = smul.addr %s843, 64
          %s845 = scalar_lea.hbm %s10, %s844
          %s846 = sshll.u32 %s816, 4
          %s847 = int_to_ptr.vmem [resolvable:$true] %s846
          %852 = dma.vmem_to_hbm [thread:$0]  %s847, 256, %s845, %s813, 64, 64, 4
        $region100: #{tpu_custom_call.1} parent=55 // pred_fallthru
          _
        // Predicated region
        $region101: #{tpu_custom_call.1} parent=55 // pred_check
          %p853 = pneg %p330
        $region102: #{tpu_custom_call.1} parent=55 // pred_check_branch
          %855 = sbr.rel (%p853) target = $region104
        $region103: #{tpu_custom_call.1} parent=55 // pred_region
          %s857 = ssub.s32 256, 256
          %858 = vsyncadd %s818, %s857
          %s859 = smul.addr %s40, 4
          %s860 = sadd.s32 %s41, %s859
          %s861 = smul.addr %s860, 64
          %s862 = scalar_lea.hbm %s11, %s861
          %s863 = sshll.u32 %s821, 4
          %s864 = int_to_ptr.vmem [resolvable:$true] %s863
          %869 = dma.vmem_to_hbm [thread:$0]  %s864, 256, %s862, %s818, 64, 64, 4
        $region104: #{tpu_custom_call.1} parent=55 // pred_fallthru
          _
      $region56: #{tpu_custom_call.1} parent=5 // pred_fallthru
        _
      %p870 = scmp.le.s32.totalorder 2, %s31
      // Predicated region
      $region105: #{tpu_custom_call.1} parent=5 // pred_check
        %p871 = pneg %p870
      $region106: #{tpu_custom_call.1} parent=5 // pred_check_branch
        %873 = sbr.rel (%p871) target = $region108
      $region107: #{tpu_custom_call.1} parent=5 // pred_region
        %s874 = ssub.s32 %s31, 2
        // Predicated region
        $region109: #{tpu_custom_call.1} parent=107 // pred_check
          %p875 = pneg %p280
        $region110: #{tpu_custom_call.1} parent=107 // pred_check_branch
          %877 = sbr.rel (%p875) target = $region112
        $region111: #{tpu_custom_call.1} parent=107 // pred_region
          %s878 = sand.u32 %s265, 1
          %s879 = scalar_lea.sflag [#allocation4], %s878
          %s880 = sand.u32 %s265, 1
          %s881 = smul.addr %s880, 8
          %s882 = scalar_lea.vmem [#allocation17], %s881
          %883 = dma.done %s879, 128
        $region112: #{tpu_custom_call.1} parent=107 // pred_fallthru
          _
        // Predicated region
        $region113: #{tpu_custom_call.1} parent=107 // pred_check
          %p884 = pneg %p308
        $region114: #{tpu_custom_call.1} parent=107 // pred_check_branch
          %886 = sbr.rel (%p884) target = $region116
        $region115: #{tpu_custom_call.1} parent=107 // pred_region
          %s887 = sand.u32 %s37, 1
          %s888 = scalar_lea.sflag [#allocation19], %s887
          %s889 = sand.u32 %s293, 1
          %s890 = smul.addr %s889, 16
          %s891 = scalar_lea.vmem [#allocation18], %s890
          %892 = dma.done %s888, 256
        $region116: #{tpu_custom_call.1} parent=107 // pred_fallthru
          _
        // Predicated region
        $region117: #{tpu_custom_call.1} parent=107 // pred_check
          %p893 = pneg %p336
        $region118: #{tpu_custom_call.1} parent=107 // pred_check_branch
          %895 = sbr.rel (%p893) target = $region120
        $region119: #{tpu_custom_call.1} parent=107 // pred_region
          %s896 = sand.u32 %s37, 1
          %s897 = scalar_lea.sflag [#allocation19], %s896
          %s898 = sand.u32 %s321, 1
          %s899 = smul.addr %s898, 16
          %s900 = scalar_lea.vmem [#allocation20], %s899
          %901 = dma.done %s897, 256
        $region120: #{tpu_custom_call.1} parent=107 // pred_fallthru
          _
      $region108: #{tpu_custom_call.1} parent=5 // pred_fallthru
        _
    $region6: #{tpu_custom_call.1} parent=1 // loop_footer
      %s35 = sadd.s32 1, %s31
    $region7: #{tpu_custom_call.1} parent=1 // loop_footer_branch
      %30 = sbr.rel target = $region3
    $region8: #{tpu_custom_call.1} parent=1 // loop_exit
      _
    %902 = vsyncpa [#allocation3], 1
    %s903 = scalar_lea.sflag [#allocation3], 1
    %904 = vsyncpa %s903, 1
    %905 = vsyncpa [#allocation6], 1
    %906 = vsyncpa [#allocation9], 1
    %907 = vsyncpa [#allocation12], 1
    %908 = vsyncpa [#allocation15], 1
    %909 = vsyncpa [#allocation4], 1
    %s910 = scalar_lea.sflag [#allocation4], 1
    %911 = vsyncpa %s910, 1
    %912 = vsyncpa [#allocation19], 1
    %s913 = scalar_lea.sflag [#allocation19], 1
    %914 = vsyncpa %s913, 1

</llo_original>
